<compile_context>
chip_gen: v6e
topology: v6e:2x2x1
jax: 0.10.0
libtpu: 0.0.40
codegen_flags: <defaults>
</compile_context>

<pallas_src>
import functools

import jax
import jax.numpy as jnp
from jax.experimental import pallas as pl
from jax.experimental.pallas import tpu as pltpu

LEAKY_SLOPE = 0.2   # nn.LeakyReLU(0.2)
BN_EPS = 1e-5       # nn.BatchNorm1d default eps
COS_EPS = 1e-8      # nn.CosineSimilarity default eps


def memory_discriminator_kernel(
    x_ref,        # (S*B, D_in)  time-major rows
    w_emb_ref,    # (D_in, H)    spectrally-normalized embedding weight
    w_gru_ref,    # (2, H, 6H)   [0] = [w_ih_x | w_ih_m], [1] = [w_hh_x | w_hh_m]
    w_head_ref,   # (H, 2*sim+O) [w_sx | w_sm | w_out]
    mem_ref,      # (S, H)       memory rows (batch-invariant)
    b_ref,        # (10, 3H)     row-packed biases / BN affine
    out_ref,      # (B, O)
    *, batch, seq_len, hidden, sim_size, out_size,
):
    H, S, B, SIM = hidden, seq_len, batch, sim_size

    biases = b_ref[...]
    b_emb  = biases[0:1, :H]
    gamma  = biases[1:2, :H]
    beta   = biases[2:3, :H]
    b_ih_x = biases[3:4, :]
    b_hh_x = biases[4:5, :]
    b_ih_m = biases[5:6, :]
    b_hh_m = biases[6:7, :]
    b_sx   = biases[7:8, :SIM]
    b_sm   = biases[8:9, :SIM]
    b_out  = biases[9:10, :out_size]

    # ---- embedding (spectral-norm Linear) + LeakyReLU(0.2) ----
    emb = jnp.dot(x_ref[...], w_emb_ref[...],
                  preferred_element_type=jnp.float32) + b_emb
    emb = jnp.where(emb >= 0.0, emb, LEAKY_SLOPE * emb)

    # ---- BatchNorm1d: per-channel batch stats over batch*seq rows ----
    mean = jnp.mean(emb, axis=0, keepdims=True)
    var = jnp.mean((emb - mean) ** 2, axis=0, keepdims=True)
    h_seq = (emb - mean) * jax.lax.rsqrt(var + BN_EPS) * gamma + beta   # (S*B, H)

    # ---- hoisted input-side GRU projections for BOTH streams (one matmul) ----
    w_gru = w_gru_ref[...]            # (2, H, 6H)
    w_ih = w_gru[0]                   # [w_ih_x | w_ih_m]
    w_hh = w_gru[1]                   # [w_hh_x | w_hh_m]
    rows_in = jnp.concatenate([h_seq, mem_ref[...]], axis=0)     # (S*B + S, H)
    gi_all = jnp.dot(rows_in, w_ih, preferred_element_type=jnp.float32)
    gi_x = gi_all[:S * B, :3 * H] + b_ih_x                       # (S*B, 3H)
    gi_m = gi_all[S * B:, 3 * H:] + b_ih_m                       # (S, 3H)

    def gru_gates(gi, gh, h):
        # PyTorch GRUCell gate order [r, z, n]
        r = jax.nn.sigmoid(gi[:, :H] + gh[:, :H])
        z = jax.nn.sigmoid(gi[:, H:2 * H] + gh[:, H:2 * H])
        n = jnp.tanh(gi[:, 2 * H:] + r * gh[:, 2 * H:])
        return (1.0 - z) * n + z * h

    # joint recurrent state: rows 0..B-1 = hx, row B = hm (batch-invariant)
    h_all = jnp.zeros((B + 1, H), jnp.float32)
    # TODO(synk): for large seq_len replace the Python unroll with lax.fori_loop
    # and a VMEM scratch state to bound vreg live ranges.
    for t in range(S):
        gh = jnp.dot(h_all, w_hh, preferred_element_type=jnp.float32)  # (B+1, 6H)
        hx = gru_gates(gi_x[t * B:(t + 1) * B], gh[:B, :3 * H] + b_hh_x, h_all[:B])
        hm = gru_gates(gi_m[t:t + 1],           gh[B:, 3 * H:] + b_hh_m, h_all[B:])
        h_all = jnp.concatenate([hx, hm], axis=0)

    # ---- final-step head: sim projections + output Linear in ONE matmul ----
    head = jnp.dot(h_all, w_head_ref[...], preferred_element_type=jnp.float32)
    px = head[:B, :SIM] + b_sx                    # hx @ w_sx + b_sx      (B, sim)
    pm = head[B:, SIM:2 * SIM] + b_sm             # hm @ w_sm + b_sm      (1, sim)
    out_pre = head[:B, 2 * SIM:]                  # hx @ w_out            (B, O)

    # cosine similarity (pm broadcast over batch); one rsqrt on EUP
    num = jnp.sum(px * pm, axis=-1, keepdims=True)
    den2 = (jnp.sum(px * px, axis=-1, keepdims=True)
            * jnp.sum(pm * pm, axis=-1, keepdims=True))
    sim = num * jax.lax.rsqrt(jnp.maximum(den2, COS_EPS * COS_EPS))

    # (hx * sim) @ w_out + b_out  ==  sim * (hx @ w_out) + b_out
    out_ref[...] = sim * out_pre + b_out


def _pack_params(params, seq_len):
    """Collapse the 20 raw parameters into a few lane-dense slabs."""
    H = params["w_emb"].shape[1]

    w_gru = jnp.stack([
        jnp.concatenate([params["w_ih_x"], params["w_ih_m"]], axis=1),
        jnp.concatenate([params["w_hh_x"], params["w_hh_m"]], axis=1),
    ], axis=0)                                                    # (2, H, 6H)

    w_head = jnp.concatenate(
        [params["w_sx"], params["w_sm"], params["w_out"]], axis=1)  # (H, 2*sim+O)

    width = 3 * H
    def row(v):
        v = v.reshape(1, -1)
        return jnp.pad(v, ((0, 0), (0, width - v.shape[1])))
    biases = jnp.concatenate([
        row(params["b_emb"]), row(params["bn_gamma"]), row(params["bn_beta"]),
        row(params["b_ih_x"]), row(params["b_hh_x"]),
        row(params["b_ih_m"]), row(params["b_hh_m"]),
        row(params["b_sx"]), row(params["b_sm"]), row(params["b_out"]),
    ], axis=0)                                                    # (10, 3H)

    mem = params["memory"][0, :seq_len, :]                        # (S, H)
    return params["w_emb"], w_gru, w_head, mem, biases


@functools.partial(jax.jit, static_argnames=("output_size",))
def memory_discriminator_forward(x, params, *, output_size):
    """x: (batch, seq, input_size) float32 -> (batch, output_size) float32."""
    B, S, D = x.shape
    H = params["w_emb"].shape[1]
    sim_size = params["w_sx"].shape[1]

    # time-major repack so each step is a contiguous row block in the kernel.
    # TODO(synk): at production sizes pass (S, B, D) / index via BlockSpec and
    # add a time-chunk grid axis (v7x has only 64 MiB VMEM) instead of this copy.
    x_tm = jnp.transpose(x, (1, 0, 2)).reshape(S * B, D)

    w_emb, w_gru, w_head, mem, biases = _pack_params(params, S)

    kernel = functools.partial(
        memory_discriminator_kernel, batch=B, seq_len=S, hidden=H,
        sim_size=sim_size, out_size=output_size)

    return pl.pallas_call(
        kernel,
        out_shape=jax.ShapeDtypeStruct((B, output_size), jnp.float32),
        in_specs=[pl.BlockSpec(memory_space=pltpu.MemorySpace.VMEM)] * 6,
        out_specs=pl.BlockSpec(memory_space=pltpu.MemorySpace.VMEM),
    )(x_tm, w_emb, w_gru, w_head, mem, biases)


def memory_discriminator_reference(x, params, *, output_size):
    """Pure-JAX reference mirroring the original (un-fused) structure."""
    B, S, D = x.shape
    H = params["w_emb"].shape[1]
    emb = x.reshape(B * S, D) @ params["w_emb"] + params["b_emb"]
    emb = jnp.where(emb >= 0.0, emb, LEAKY_SLOPE * emb)
    mean = emb.mean(0, keepdims=True)
    var = ((emb - mean) ** 2).mean(0, keepdims=True)
    h = (emb - mean) * jax.lax.rsqrt(var + BN_EPS) * params["bn_gamma"] + params["bn_beta"]
    h = h.reshape(B, S, H)
    mem = params["memory"][0, :S, :]

    def gru(xt, h0, w_ih, w_hh, b_ih, b_hh):
        gi = xt @ w_ih + b_ih
        gh = h0 @ w_hh + b_hh
        r = jax.nn.sigmoid(gi[:, :H] + gh[:, :H])
        z = jax.nn.sigmoid(gi[:, H:2 * H] + gh[:, H:2 * H])
        n = jnp.tanh(gi[:, 2 * H:] + r * gh[:, 2 * H:])
        return (1.0 - z) * n + z * h0

    hx = jnp.zeros((B, H), jnp.float32)
    hm = jnp.zeros((B, H), jnp.float32)
    out = None
    for t in range(S):
        xt = h[:, t, :]
        mt = jnp.broadcast_to(mem[t:t + 1], (B, H))
        hx = gru(xt, hx, params["w_ih_x"], params["w_hh_x"],
                 params["b_ih_x"], params["b_hh_x"])
        hm = gru(mt, hm, params["w_ih_m"], params["w_hh_m"],
                 params["b_ih_m"], params["b_hh_m"])
        px = hx @ params["w_sx"] + params["b_sx"]
        pm = hm @ params["w_sm"] + params["b_sm"]
        num = jnp.sum(px * pm, -1, keepdims=True)
        den = jnp.maximum(jnp.sqrt(jnp.sum(px * px, -1, keepdims=True))
                          * jnp.sqrt(jnp.sum(pm * pm, -1, keepdims=True)), COS_EPS)
        simv = num / den
        out = (hx * simv) @ params["w_out"] + params["b_out"]
    return out.reshape(-1, output_size)


def init_params(key, input_size, hidden_size, output_size, max_seq_len, sim_size):
    keys = jax.random.split(key, 16)

    def linear(kw, kb, fan_in, fan_out):
        # torch nn.Linear init: U(-1/sqrt(fan_in), 1/sqrt(fan_in)); stored transposed.
        bound = 1.0 / jnp.sqrt(fan_in)
        w = jax.random.uniform(kw, (fan_in, fan_out), jnp.float32, -bound, bound)
        b = jax.random.uniform(kb, (1, fan_out), jnp.float32, -bound, bound)
        return w, b

    # embedding Linear + spectral norm (divide by exact top singular value)
    w_emb, b_emb = linear(keys[0], keys[1], input_size, hidden_size)
    sigma = jnp.linalg.svd(w_emb, compute_uv=False)[0]
    w_emb = w_emb / sigma

    def gru(k0, k1, k2, k3):
        bound = 1.0 / jnp.sqrt(hidden_size)
        w_ih = jax.random.uniform(k0, (hidden_size, 3 * hidden_size), jnp.float32, -bound, bound)
        w_hh = jax.random.uniform(k1, (hidden_size, 3 * hidden_size), jnp.float32, -bound, bound)
        b_ih = jax.random.uniform(k2, (1, 3 * hidden_size), jnp.float32, -bound, bound)
        b_hh = jax.random.uniform(k3, (1, 3 * hidden_size), jnp.float32, -bound, bound)
        return w_ih, w_hh, b_ih, b_hh

    w_ih_x, w_hh_x, b_ih_x, b_hh_x = gru(keys[2], keys[3], keys[4], keys[5])
    w_ih_m, w_hh_m, b_ih_m, b_hh_m = gru(keys[6], keys[7], keys[8], keys[9])

    w_sx, b_sx = linear(keys[10], keys[11], hidden_size, sim_size)
    w_sm, b_sm = linear(keys[12], keys[13], hidden_size, sim_size)
    w_out, b_out = linear(keys[14], keys[15], hidden_size, output_size)

    memory = jax.random.normal(jax.random.fold_in(key, 99),
                               (1, max_seq_len, hidden_size), jnp.float32)

    return dict(
        w_emb=w_emb, b_emb=b_emb,
        bn_gamma=jnp.ones((1, hidden_size), jnp.float32),
        bn_beta=jnp.zeros((1, hidden_size), jnp.float32),
        memory=memory,
        w_ih_x=w_ih_x, w_hh_x=w_hh_x, b_ih_x=b_ih_x, b_hh_x=b_hh_x,
        w_ih_m=w_ih_m, w_hh_m=w_hh_m, b_ih_m=b_ih_m, b_hh_m=b_hh_m,
        w_sx=w_sx, b_sx=b_sx, w_sm=w_sm, b_sm=b_sm,
        w_out=w_out, b_out=b_out,
    )


if __name__ == "__main__":
    INPUT_SIZE, HIDDEN_SIZE, OUTPUT_SIZE = 16, 32, 4
    MAX_SEQ_LEN, SEQ_LEN, BATCH, SIM_SIZE = 8, 8, 2, 4

    root = jax.random.PRNGKey(0)
    k_params, k_x = jax.random.split(root)

    params = init_params(k_params, INPUT_SIZE, HIDDEN_SIZE, OUTPUT_SIZE,
                         MAX_SEQ_LEN, SIM_SIZE)
    x = jax.random.normal(k_x, (BATCH, SEQ_LEN, INPUT_SIZE), jnp.float32)

    out = memory_discriminator_forward(x, params, output_size=OUTPUT_SIZE)
    out = jax.block_until_ready(out)
    assert out.shape == (BATCH, OUTPUT_SIZE)
    assert bool(jnp.all(jnp.isfinite(out)))

    # cross-check against the un-fused pure-JAX reference (loose tolerance:
    # MXU matmul rounding differs between fused/un-fused accumulation orders).
    ref = memory_discriminator_reference(x, params, output_size=OUTPUT_SIZE)
    max_err = float(jnp.max(jnp.abs(out - ref)))
    assert max_err < 5e-2, f"kernel/reference mismatch: max abs err {max_err}"

    print("KERNEL_OK")
</pallas_src>

<mosaic_0001>
module attributes {stable_mosaic.version = 11 : i64} {
  func.func @memory_discriminator_kernel(%arg0: memref<16x16xf32, #tpu.memory_space<vmem>>, %arg1: memref<16x32xf32, #tpu.memory_space<vmem>>, %arg2: memref<2x32x192xf32, #tpu.memory_space<vmem>>, %arg3: memref<32x12xf32, #tpu.memory_space<vmem>>, %arg4: memref<8x32xf32, #tpu.memory_space<vmem>>, %arg5: memref<10x96xf32, #tpu.memory_space<vmem>>, %arg6: memref<2x4xf32, #tpu.memory_space<vmem>>) attributes {dimension_semantics = [], scalar_prefetch = 0 : i64, scratch_operands = 0 : i64, tpu.core_type = #tpu.core_type<tc>} {
    %c0 = arith.constant 0 : index
    %c0_0 = arith.constant 0 : index
    %0 = vector.load %arg5[%c0, %c0_0] : memref<10x96xf32, #tpu.memory_space<vmem>>, vector<10x96xf32>
    %1 = vector.extract_strided_slice %0 {offsets = [0, 0], sizes = [1, 32], strides = [1, 1]} : vector<10x96xf32> to vector<1x32xf32>
    %2 = vector.extract_strided_slice %0 {offsets = [1, 0], sizes = [1, 32], strides = [1, 1]} : vector<10x96xf32> to vector<1x32xf32>
    %3 = vector.extract_strided_slice %0 {offsets = [2, 0], sizes = [1, 32], strides = [1, 1]} : vector<10x96xf32> to vector<1x32xf32>
    %4 = vector.extract_strided_slice %0 {offsets = [3, 0], sizes = [1, 96], strides = [1, 1]} : vector<10x96xf32> to vector<1x96xf32>
    %5 = vector.extract_strided_slice %0 {offsets = [4, 0], sizes = [1, 96], strides = [1, 1]} : vector<10x96xf32> to vector<1x96xf32>
    %6 = vector.extract_strided_slice %0 {offsets = [5, 0], sizes = [1, 96], strides = [1, 1]} : vector<10x96xf32> to vector<1x96xf32>
    %7 = vector.extract_strided_slice %0 {offsets = [6, 0], sizes = [1, 96], strides = [1, 1]} : vector<10x96xf32> to vector<1x96xf32>
    %8 = vector.extract_strided_slice %0 {offsets = [7, 0], sizes = [1, 4], strides = [1, 1]} : vector<10x96xf32> to vector<1x4xf32>
    %9 = vector.extract_strided_slice %0 {offsets = [8, 0], sizes = [1, 4], strides = [1, 1]} : vector<10x96xf32> to vector<1x4xf32>
    %10 = vector.extract_strided_slice %0 {offsets = [9, 0], sizes = [1, 4], strides = [1, 1]} : vector<10x96xf32> to vector<1x4xf32>
    %c0_1 = arith.constant 0 : index
    %c0_2 = arith.constant 0 : index
    %11 = vector.load %arg0[%c0_1, %c0_2] : memref<16x16xf32, #tpu.memory_space<vmem>>, vector<16x16xf32>
    %c0_3 = arith.constant 0 : index
    %c0_4 = arith.constant 0 : index
    %12 = vector.load %arg1[%c0_3, %c0_4] : memref<16x32xf32, #tpu.memory_space<vmem>>, vector<16x32xf32>
    %cst = arith.constant dense<0.000000e+00> : vector<16x32xf32>
    %13 = tpu.matmul %11, %12, %cst {dimension_numbers = #tpu.dot_dimension_numbers<[1], [0], [0], [1], [0, 0, 1, 1], [], []>} : vector<16x16xf32>, vector<16x32xf32>, vector<16x32xf32> -> vector<16x32xf32>
    %14 = vector.broadcast %1 : vector<1x32xf32> to vector<16x32xf32>
    %15 = arith.addf %13, %14 : vector<16x32xf32>
    %cst_5 = arith.constant 0.000000e+00 : f32
    %16 = vector.broadcast %cst_5 : f32 to vector<16x32xf32>
    %17 = arith.cmpf oge, %15, %16 : vector<16x32xf32>
    %cst_6 = arith.constant 2.000000e-01 : f32
    %18 = vector.broadcast %cst_6 : f32 to vector<16x32xf32>
    %19 = arith.mulf %18, %15 : vector<16x32xf32>
    %20 = arith.select %17, %15, %19 : vector<16x32xi1>, vector<16x32xf32>
    %cst_7 = arith.constant dense<0.000000e+00> : vector<32xf32>
    %21 = vector.multi_reduction <add>, %20, %cst_7 [0] : vector<16x32xf32> to vector<32xf32>
    %22 = vector.shape_cast %21 : vector<32xf32> to vector<1x32xf32>
    %cst_8 = arith.constant 1.600000e+01 : f32
    %23 = vector.broadcast %cst_8 : f32 to vector<1x32xf32>
    %24 = arith.divf %22, %23 : vector<1x32xf32>
    %25 = vector.broadcast %24 : vector<1x32xf32> to vector<16x32xf32>
    %26 = arith.subf %20, %25 : vector<16x32xf32>
    %27 = arith.mulf %26, %26 : vector<16x32xf32>
    %cst_9 = arith.constant dense<0.000000e+00> : vector<32xf32>
    %28 = vector.multi_reduction <add>, %27, %cst_9 [0] : vector<16x32xf32> to vector<32xf32>
    %29 = vector.shape_cast %28 : vector<32xf32> to vector<1x32xf32>
    %cst_10 = arith.constant 1.600000e+01 : f32
    %30 = vector.broadcast %cst_10 : f32 to vector<1x32xf32>
    %31 = arith.divf %29, %30 : vector<1x32xf32>
    %32 = vector.broadcast %24 : vector<1x32xf32> to vector<16x32xf32>
    %33 = arith.subf %20, %32 : vector<16x32xf32>
    %cst_11 = arith.constant 9.99999974E-6 : f32
    %34 = vector.broadcast %cst_11 : f32 to vector<1x32xf32>
    %35 = arith.addf %31, %34 : vector<1x32xf32>
    %36 = math.rsqrt %35 : vector<1x32xf32>
    %37 = vector.broadcast %36 : vector<1x32xf32> to vector<16x32xf32>
    %38 = arith.mulf %33, %37 : vector<16x32xf32>
    %39 = vector.broadcast %2 : vector<1x32xf32> to vector<16x32xf32>
    %40 = arith.mulf %38, %39 : vector<16x32xf32>
    %41 = vector.broadcast %3 : vector<1x32xf32> to vector<16x32xf32>
    %42 = arith.addf %40, %41 : vector<16x32xf32>
    %c0_12 = arith.constant 0 : index
    %c0_13 = arith.constant 0 : index
    %c0_14 = arith.constant 0 : index
    %43 = vector.load %arg2[%c0_12, %c0_13, %c0_14] : memref<2x32x192xf32, #tpu.memory_space<vmem>>, vector<2x32x192xf32>
    %44 = vector.extract_strided_slice %43 {offsets = [0, 0, 0], sizes = [1, 32, 192], strides = [1, 1, 1]} : vector<2x32x192xf32> to vector<1x32x192xf32>
    %45 = vector.shape_cast %44 : vector<1x32x192xf32> to vector<32x192xf32>
    %46 = vector.extract_strided_slice %43 {offsets = [1, 0, 0], sizes = [1, 32, 192], strides = [1, 1, 1]} : vector<2x32x192xf32> to vector<1x32x192xf32>
    %47 = vector.shape_cast %46 : vector<1x32x192xf32> to vector<32x192xf32>
    %c0_15 = arith.constant 0 : index
    %c0_16 = arith.constant 0 : index
    %48 = vector.load %arg4[%c0_15, %c0_16] : memref<8x32xf32, #tpu.memory_space<vmem>>, vector<8x32xf32>
    %49 = tpu.concatenate %42, %48 in 0 : vector<16x32xf32>, vector<8x32xf32> -> vector<24x32xf32>
    %cst_17 = arith.constant dense<0.000000e+00> : vector<24x192xf32>
    %50 = tpu.matmul %49, %45, %cst_17 {dimension_numbers = #tpu.dot_dimension_numbers<[1], [0], [0], [1], [0, 0, 1, 1], [], []>} : vector<24x32xf32>, vector<32x192xf32>, vector<24x192xf32> -> vector<24x192xf32>
    %51 = vector.extract_strided_slice %50 {offsets = [0, 0], sizes = [16, 96], strides = [1, 1]} : vector<24x192xf32> to vector<16x96xf32>
    %52 = vector.broadcast %4 : vector<1x96xf32> to vector<16x96xf32>
    %53 = arith.addf %51, %52 : vector<16x96xf32>
    %54 = vector.extract_strided_slice %50 {offsets = [16, 96], sizes = [8, 96], strides = [1, 1]} : vector<24x192xf32> to vector<8x96xf32>
    %55 = vector.broadcast %6 : vector<1x96xf32> to vector<8x96xf32>
    %56 = arith.addf %54, %55 : vector<8x96xf32>
    %cst_18 = arith.constant 0.000000e+00 : f32
    %57 = vector.broadcast %cst_18 : f32 to vector<3x32xf32>
    %cst_19 = arith.constant dense<0.000000e+00> : vector<3x192xf32>
    %58 = tpu.matmul %57, %47, %cst_19 {dimension_numbers = #tpu.dot_dimension_numbers<[1], [0], [0], [1], [0, 0, 1, 1], [], []>} : vector<3x32xf32>, vector<32x192xf32>, vector<3x192xf32> -> vector<3x192xf32>
    %59 = vector.extract_strided_slice %53 {offsets = [0, 0], sizes = [2, 96], strides = [1, 1]} : vector<16x96xf32> to vector<2x96xf32>
    %60 = vector.extract_strided_slice %58 {offsets = [0, 0], sizes = [2, 96], strides = [1, 1]} : vector<3x192xf32> to vector<2x96xf32>
    %61 = vector.broadcast %5 : vector<1x96xf32> to vector<2x96xf32>
    %62 = arith.addf %60, %61 : vector<2x96xf32>
    %63 = vector.extract_strided_slice %57 {offsets = [0, 0], sizes = [2, 32], strides = [1, 1]} : vector<3x32xf32> to vector<2x32xf32>
    %64 = vector.extract_strided_slice %59 {offsets = [0, 0], sizes = [2, 32], strides = [1, 1]} : vector<2x96xf32> to vector<2x32xf32>
    %65 = vector.extract_strided_slice %62 {offsets = [0, 0], sizes = [2, 32], strides = [1, 1]} : vector<2x96xf32> to vector<2x32xf32>
    %66 = arith.addf %64, %65 : vector<2x32xf32>
    %67 = arith.negf %66 : vector<2x32xf32>
    %68 = math.exp %67 : vector<2x32xf32>
    %cst_20 = arith.constant 1.000000e+00 : f32
    %69 = vector.broadcast %cst_20 : f32 to vector<2x32xf32>
    %70 = arith.addf %69, %68 : vector<2x32xf32>
    %71 = arith.divf %69, %70 : vector<2x32xf32>
    %72 = vector.extract_strided_slice %59 {offsets = [0, 32], sizes = [2, 32], strides = [1, 1]} : vector<2x96xf32> to vector<2x32xf32>
    %73 = vector.extract_strided_slice %62 {offsets = [0, 32], sizes = [2, 32], strides = [1, 1]} : vector<2x96xf32> to vector<2x32xf32>
    %74 = arith.addf %72, %73 : vector<2x32xf32>
    %75 = arith.negf %74 : vector<2x32xf32>
    %76 = math.exp %75 : vector<2x32xf32>
    %cst_21 = arith.constant 1.000000e+00 : f32
    %77 = vector.broadcast %cst_21 : f32 to vector<2x32xf32>
    %78 = arith.addf %77, %76 : vector<2x32xf32>
    %79 = arith.divf %77, %78 : vector<2x32xf32>
    %80 = vector.extract_strided_slice %59 {offsets = [0, 64], sizes = [2, 32], strides = [1, 1]} : vector<2x96xf32> to vector<2x32xf32>
    %81 = vector.extract_strided_slice %62 {offsets = [0, 64], sizes = [2, 32], strides = [1, 1]} : vector<2x96xf32> to vector<2x32xf32>
    %82 = arith.mulf %71, %81 : vector<2x32xf32>
    %83 = arith.addf %80, %82 : vector<2x32xf32>
    %84 = math.tanh %83 : vector<2x32xf32>
    %cst_22 = arith.constant 1.000000e+00 : f32
    %85 = vector.broadcast %cst_22 : f32 to vector<2x32xf32>
    %86 = arith.subf %85, %79 : vector<2x32xf32>
    %87 = arith.mulf %86, %84 : vector<2x32xf32>
    %88 = arith.mulf %79, %63 : vector<2x32xf32>
    %89 = arith.addf %87, %88 : vector<2x32xf32>
    %90 = vector.extract_strided_slice %56 {offsets = [0, 0], sizes = [1, 96], strides = [1, 1]} : vector<8x96xf32> to vector<1x96xf32>
    %91 = vector.extract_strided_slice %58 {offsets = [2, 96], sizes = [1, 96], strides = [1, 1]} : vector<3x192xf32> to vector<1x96xf32>
    %92 = arith.addf %91, %7 : vector<1x96xf32>
    %93 = vector.extract_strided_slice %57 {offsets = [2, 0], sizes = [1, 32], strides = [1, 1]} : vector<3x32xf32> to vector<1x32xf32>
    %94 = vector.extract_strided_slice %90 {offsets = [0, 0], sizes = [1, 32], strides = [1, 1]} : vector<1x96xf32> to vector<1x32xf32>
    %95 = vector.extract_strided_slice %92 {offsets = [0, 0], sizes = [1, 32], strides = [1, 1]} : vector<1x96xf32> to vector<1x32xf32>
    %96 = arith.addf %94, %95 : vector<1x32xf32>
    %97 = arith.negf %96 : vector<1x32xf32>
    %98 = math.exp %97 : vector<1x32xf32>
    %cst_23 = arith.constant 1.000000e+00 : f32
    %99 = vector.broadcast %cst_23 : f32 to vector<1x32xf32>
    %100 = arith.addf %99, %98 : vector<1x32xf32>
    %101 = arith.divf %99, %100 : vector<1x32xf32>
    %102 = vector.extract_strided_slice %90 {offsets = [0, 32], sizes = [1, 32], strides = [1, 1]} : vector<1x96xf32> to vector<1x32xf32>
    %103 = vector.extract_strided_slice %92 {offsets = [0, 32], sizes = [1, 32], strides = [1, 1]} : vector<1x96xf32> to vector<1x32xf32>
    %104 = arith.addf %102, %103 : vector<1x32xf32>
    %105 = arith.negf %104 : vector<1x32xf32>
    %106 = math.exp %105 : vector<1x32xf32>
    %cst_24 = arith.constant 1.000000e+00 : f32
    %107 = vector.broadcast %cst_24 : f32 to vector<1x32xf32>
    %108 = arith.addf %107, %106 : vector<1x32xf32>
    %109 = arith.divf %107, %108 : vector<1x32xf32>
    %110 = vector.extract_strided_slice %90 {offsets = [0, 64], sizes = [1, 32], strides = [1, 1]} : vector<1x96xf32> to vector<1x32xf32>
    %111 = vector.extract_strided_slice %92 {offsets = [0, 64], sizes = [1, 32], strides = [1, 1]} : vector<1x96xf32> to vector<1x32xf32>
    %112 = arith.mulf %101, %111 : vector<1x32xf32>
    %113 = arith.addf %110, %112 : vector<1x32xf32>
    %114 = math.tanh %113 : vector<1x32xf32>
    %cst_25 = arith.constant 1.000000e+00 : f32
    %115 = vector.broadcast %cst_25 : f32 to vector<1x32xf32>
    %116 = arith.subf %115, %109 : vector<1x32xf32>
    %117 = arith.mulf %116, %114 : vector<1x32xf32>
    %118 = arith.mulf %109, %93 : vector<1x32xf32>
    %119 = arith.addf %117, %118 : vector<1x32xf32>
    %120 = tpu.concatenate %89, %119 in 0 : vector<2x32xf32>, vector<1x32xf32> -> vector<3x32xf32>
    %cst_26 = arith.constant dense<0.000000e+00> : vector<3x192xf32>
    %121 = tpu.matmul %120, %47, %cst_26 {dimension_numbers = #tpu.dot_dimension_numbers<[1], [0], [0], [1], [0, 0, 1, 1], [], []>} : vector<3x32xf32>, vector<32x192xf32>, vector<3x192xf32> -> vector<3x192xf32>
    %122 = vector.extract_strided_slice %53 {offsets = [2, 0], sizes = [2, 96], strides = [1, 1]} : vector<16x96xf32> to vector<2x96xf32>
    %123 = vector.extract_strided_slice %121 {offsets = [0, 0], sizes = [2, 96], strides = [1, 1]} : vector<3x192xf32> to vector<2x96xf32>
    %124 = vector.broadcast %5 : vector<1x96xf32> to vector<2x96xf32>
    %125 = arith.addf %123, %124 : vector<2x96xf32>
    %126 = vector.extract_strided_slice %120 {offsets = [0, 0], sizes = [2, 32], strides = [1, 1]} : vector<3x32xf32> to vector<2x32xf32>
    %127 = vector.extract_strided_slice %122 {offsets = [0, 0], sizes = [2, 32], strides = [1, 1]} : vector<2x96xf32> to vector<2x32xf32>
    %128 = vector.extract_strided_slice %125 {offsets = [0, 0], sizes = [2, 32], strides = [1, 1]} : vector<2x96xf32> to vector<2x32xf32>
    %129 = arith.addf %127, %128 : vector<2x32xf32>
    %130 = arith.negf %129 : vector<2x32xf32>
    %131 = math.exp %130 : vector<2x32xf32>
    %cst_27 = arith.constant 1.000000e+00 : f32
    %132 = vector.broadcast %cst_27 : f32 to vector<2x32xf32>
    %133 = arith.addf %132, %131 : vector<2x32xf32>
    %134 = arith.divf %132, %133 : vector<2x32xf32>
    %135 = vector.extract_strided_slice %122 {offsets = [0, 32], sizes = [2, 32], strides = [1, 1]} : vector<2x96xf32> to vector<2x32xf32>
    %136 = vector.extract_strided_slice %125 {offsets = [0, 32], sizes = [2, 32], strides = [1, 1]} : vector<2x96xf32> to vector<2x32xf32>
    %137 = arith.addf %135, %136 : vector<2x32xf32>
    %138 = arith.negf %137 : vector<2x32xf32>
    %139 = math.exp %138 : vector<2x32xf32>
    %cst_28 = arith.constant 1.000000e+00 : f32
    %140 = vector.broadcast %cst_28 : f32 to vector<2x32xf32>
    %141 = arith.addf %140, %139 : vector<2x32xf32>
    %142 = arith.divf %140, %141 : vector<2x32xf32>
    %143 = vector.extract_strided_slice %122 {offsets = [0, 64], sizes = [2, 32], strides = [1, 1]} : vector<2x96xf32> to vector<2x32xf32>
    %144 = vector.extract_strided_slice %125 {offsets = [0, 64], sizes = [2, 32], strides = [1, 1]} : vector<2x96xf32> to vector<2x32xf32>
    %145 = arith.mulf %134, %144 : vector<2x32xf32>
    %146 = arith.addf %143, %145 : vector<2x32xf32>
    %147 = math.tanh %146 : vector<2x32xf32>
    %cst_29 = arith.constant 1.000000e+00 : f32
    %148 = vector.broadcast %cst_29 : f32 to vector<2x32xf32>
    %149 = arith.subf %148, %142 : vector<2x32xf32>
    %150 = arith.mulf %149, %147 : vector<2x32xf32>
    %151 = arith.mulf %142, %126 : vector<2x32xf32>
    %152 = arith.addf %150, %151 : vector<2x32xf32>
    %153 = vector.extract_strided_slice %56 {offsets = [1, 0], sizes = [1, 96], strides = [1, 1]} : vector<8x96xf32> to vector<1x96xf32>
    %154 = vector.extract_strided_slice %121 {offsets = [2, 96], sizes = [1, 96], strides = [1, 1]} : vector<3x192xf32> to vector<1x96xf32>
    %155 = arith.addf %154, %7 : vector<1x96xf32>
    %156 = vector.extract_strided_slice %120 {offsets = [2, 0], sizes = [1, 32], strides = [1, 1]} : vector<3x32xf32> to vector<1x32xf32>
    %157 = vector.extract_strided_slice %153 {offsets = [0, 0], sizes = [1, 32], strides = [1, 1]} : vector<1x96xf32> to vector<1x32xf32>
    %158 = vector.extract_strided_slice %155 {offsets = [0, 0], sizes = [1, 32], strides = [1, 1]} : vector<1x96xf32> to vector<1x32xf32>
    %159 = arith.addf %157, %158 : vector<1x32xf32>
    %160 = arith.negf %159 : vector<1x32xf32>
    %161 = math.exp %160 : vector<1x32xf32>
    %cst_30 = arith.constant 1.000000e+00 : f32
    %162 = vector.broadcast %cst_30 : f32 to vector<1x32xf32>
    %163 = arith.addf %162, %161 : vector<1x32xf32>
    %164 = arith.divf %162, %163 : vector<1x32xf32>
    %165 = vector.extract_strided_slice %153 {offsets = [0, 32], sizes = [1, 32], strides = [1, 1]} : vector<1x96xf32> to vector<1x32xf32>
    %166 = vector.extract_strided_slice %155 {offsets = [0, 32], sizes = [1, 32], strides = [1, 1]} : vector<1x96xf32> to vector<1x32xf32>
    %167 = arith.addf %165, %166 : vector<1x32xf32>
    %168 = arith.negf %167 : vector<1x32xf32>
    %169 = math.exp %168 : vector<1x32xf32>
    %cst_31 = arith.constant 1.000000e+00 : f32
    %170 = vector.broadcast %cst_31 : f32 to vector<1x32xf32>
    %171 = arith.addf %170, %169 : vector<1x32xf32>
    %172 = arith.divf %170, %171 : vector<1x32xf32>
    %173 = vector.extract_strided_slice %153 {offsets = [0, 64], sizes = [1, 32], strides = [1, 1]} : vector<1x96xf32> to vector<1x32xf32>
    %174 = vector.extract_strided_slice %155 {offsets = [0, 64], sizes = [1, 32], strides = [1, 1]} : vector<1x96xf32> to vector<1x32xf32>
    %175 = arith.mulf %164, %174 : vector<1x32xf32>
    %176 = arith.addf %173, %175 : vector<1x32xf32>
    %177 = math.tanh %176 : vector<1x32xf32>
    %cst_32 = arith.constant 1.000000e+00 : f32
    %178 = vector.broadcast %cst_32 : f32 to vector<1x32xf32>
    %179 = arith.subf %178, %172 : vector<1x32xf32>
    %180 = arith.mulf %179, %177 : vector<1x32xf32>
    %181 = arith.mulf %172, %156 : vector<1x32xf32>
    %182 = arith.addf %180, %181 : vector<1x32xf32>
    %183 = tpu.concatenate %152, %182 in 0 : vector<2x32xf32>, vector<1x32xf32> -> vector<3x32xf32>
    %cst_33 = arith.constant dense<0.000000e+00> : vector<3x192xf32>
    %184 = tpu.matmul %183, %47, %cst_33 {dimension_numbers = #tpu.dot_dimension_numbers<[1], [0], [0], [1], [0, 0, 1, 1], [], []>} : vector<3x32xf32>, vector<32x192xf32>, vector<3x192xf32> -> vector<3x192xf32>
    %185 = vector.extract_strided_slice %53 {offsets = [4, 0], sizes = [2, 96], strides = [1, 1]} : vector<16x96xf32> to vector<2x96xf32>
    %186 = vector.extract_strided_slice %184 {offsets = [0, 0], sizes = [2, 96], strides = [1, 1]} : vector<3x192xf32> to vector<2x96xf32>
    %187 = vector.broadcast %5 : vector<1x96xf32> to vector<2x96xf32>
    %188 = arith.addf %186, %187 : vector<2x96xf32>
    %189 = vector.extract_strided_slice %183 {offsets = [0, 0], sizes = [2, 32], strides = [1, 1]} : vector<3x32xf32> to vector<2x32xf32>
    %190 = vector.extract_strided_slice %185 {offsets = [0, 0], sizes = [2, 32], strides = [1, 1]} : vector<2x96xf32> to vector<2x32xf32>
    %191 = vector.extract_strided_slice %188 {offsets = [0, 0], sizes = [2, 32], strides = [1, 1]} : vector<2x96xf32> to vector<2x32xf32>
    %192 = arith.addf %190, %191 : vector<2x32xf32>
    %193 = arith.negf %192 : vector<2x32xf32>
    %194 = math.exp %193 : vector<2x32xf32>
    %cst_34 = arith.constant 1.000000e+00 : f32
    %195 = vector.broadcast %cst_34 : f32 to vector<2x32xf32>
    %196 = arith.addf %195, %194 : vector<2x32xf32>
    %197 = arith.divf %195, %196 : vector<2x32xf32>
    %198 = vector.extract_strided_slice %185 {offsets = [0, 32], sizes = [2, 32], strides = [1, 1]} : vector<2x96xf32> to vector<2x32xf32>
    %199 = vector.extract_strided_slice %188 {offsets = [0, 32], sizes = [2, 32], strides = [1, 1]} : vector<2x96xf32> to vector<2x32xf32>
    %200 = arith.addf %198, %199 : vector<2x32xf32>
    %201 = arith.negf %200 : vector<2x32xf32>
    %202 = math.exp %201 : vector<2x32xf32>
    %cst_35 = arith.constant 1.000000e+00 : f32
    %203 = vector.broadcast %cst_35 : f32 to vector<2x32xf32>
    %204 = arith.addf %203, %202 : vector<2x32xf32>
    %205 = arith.divf %203, %204 : vector<2x32xf32>
    %206 = vector.extract_strided_slice %185 {offsets = [0, 64], sizes = [2, 32], strides = [1, 1]} : vector<2x96xf32> to vector<2x32xf32>
    %207 = vector.extract_strided_slice %188 {offsets = [0, 64], sizes = [2, 32], strides = [1, 1]} : vector<2x96xf32> to vector<2x32xf32>
    %208 = arith.mulf %197, %207 : vector<2x32xf32>
    %209 = arith.addf %206, %208 : vector<2x32xf32>
    %210 = math.tanh %209 : vector<2x32xf32>
    %cst_36 = arith.constant 1.000000e+00 : f32
    %211 = vector.broadcast %cst_36 : f32 to vector<2x32xf32>
    %212 = arith.subf %211, %205 : vector<2x32xf32>
    %213 = arith.mulf %212, %210 : vector<2x32xf32>
    %214 = arith.mulf %205, %189 : vector<2x32xf32>
    %215 = arith.addf %213, %214 : vector<2x32xf32>
    %216 = vector.extract_strided_slice %56 {offsets = [2, 0], sizes = [1, 96], strides = [1, 1]} : vector<8x96xf32> to vector<1x96xf32>
    %217 = vector.extract_strided_slice %184 {offsets = [2, 96], sizes = [1, 96], strides = [1, 1]} : vector<3x192xf32> to vector<1x96xf32>
    %218 = arith.addf %217, %7 : vector<1x96xf32>
    %219 = vector.extract_strided_slice %183 {offsets = [2, 0], sizes = [1, 32], strides = [1, 1]} : vector<3x32xf32> to vector<1x32xf32>
    %220 = vector.extract_strided_slice %216 {offsets = [0, 0], sizes = [1, 32], strides = [1, 1]} : vector<1x96xf32> to vector<1x32xf32>
    %221 = vector.extract_strided_slice %218 {offsets = [0, 0], sizes = [1, 32], strides = [1, 1]} : vector<1x96xf32> to vector<1x32xf32>
    %222 = arith.addf %220, %221 : vector<1x32xf32>
    %223 = arith.negf %222 : vector<1x32xf32>
    %224 = math.exp %223 : vector<1x32xf32>
    %cst_37 = arith.constant 1.000000e+00 : f32
    %225 = vector.broadcast %cst_37 : f32 to vector<1x32xf32>
    %226 = arith.addf %225, %224 : vector<1x32xf32>
    %227 = arith.divf %225, %226 : vector<1x32xf32>
    %228 = vector.extract_strided_slice %216 {offsets = [0, 32], sizes = [1, 32], strides = [1, 1]} : vector<1x96xf32> to vector<1x32xf32>
    %229 = vector.extract_strided_slice %218 {offsets = [0, 32], sizes = [1, 32], strides = [1, 1]} : vector<1x96xf32> to vector<1x32xf32>
    %230 = arith.addf %228, %229 : vector<1x32xf32>
    %231 = arith.negf %230 : vector<1x32xf32>
    %232 = math.exp %231 : vector<1x32xf32>
    %cst_38 = arith.constant 1.000000e+00 : f32
    %233 = vector.broadcast %cst_38 : f32 to vector<1x32xf32>
    %234 = arith.addf %233, %232 : vector<1x32xf32>
    %235 = arith.divf %233, %234 : vector<1x32xf32>
    %236 = vector.extract_strided_slice %216 {offsets = [0, 64], sizes = [1, 32], strides = [1, 1]} : vector<1x96xf32> to vector<1x32xf32>
    %237 = vector.extract_strided_slice %218 {offsets = [0, 64], sizes = [1, 32], strides = [1, 1]} : vector<1x96xf32> to vector<1x32xf32>
    %238 = arith.mulf %227, %237 : vector<1x32xf32>
    %239 = arith.addf %236, %238 : vector<1x32xf32>
    %240 = math.tanh %239 : vector<1x32xf32>
    %cst_39 = arith.constant 1.000000e+00 : f32
    %241 = vector.broadcast %cst_39 : f32 to vector<1x32xf32>
    %242 = arith.subf %241, %235 : vector<1x32xf32>
    %243 = arith.mulf %242, %240 : vector<1x32xf32>
    %244 = arith.mulf %235, %219 : vector<1x32xf32>
    %245 = arith.addf %243, %244 : vector<1x32xf32>
    %246 = tpu.concatenate %215, %245 in 0 : vector<2x32xf32>, vector<1x32xf32> -> vector<3x32xf32>
    %cst_40 = arith.constant dense<0.000000e+00> : vector<3x192xf32>
    %247 = tpu.matmul %246, %47, %cst_40 {dimension_numbers = #tpu.dot_dimension_numbers<[1], [0], [0], [1], [0, 0, 1, 1], [], []>} : vector<3x32xf32>, vector<32x192xf32>, vector<3x192xf32> -> vector<3x192xf32>
    %248 = vector.extract_strided_slice %53 {offsets = [6, 0], sizes = [2, 96], strides = [1, 1]} : vector<16x96xf32> to vector<2x96xf32>
    %249 = vector.extract_strided_slice %247 {offsets = [0, 0], sizes = [2, 96], strides = [1, 1]} : vector<3x192xf32> to vector<2x96xf32>
    %250 = vector.broadcast %5 : vector<1x96xf32> to vector<2x96xf32>
    %251 = arith.addf %249, %250 : vector<2x96xf32>
    %252 = vector.extract_strided_slice %246 {offsets = [0, 0], sizes = [2, 32], strides = [1, 1]} : vector<3x32xf32> to vector<2x32xf32>
    %253 = vector.extract_strided_slice %248 {offsets = [0, 0], sizes = [2, 32], strides = [1, 1]} : vector<2x96xf32> to vector<2x32xf32>
    %254 = vector.extract_strided_slice %251 {offsets = [0, 0], sizes = [2, 32], strides = [1, 1]} : vector<2x96xf32> to vector<2x32xf32>
    %255 = arith.addf %253, %254 : vector<2x32xf32>
    %256 = arith.negf %255 : vector<2x32xf32>
    %257 = math.exp %256 : vector<2x32xf32>
    %cst_41 = arith.constant 1.000000e+00 : f32
    %258 = vector.broadcast %cst_41 : f32 to vector<2x32xf32>
    %259 = arith.addf %258, %257 : vector<2x32xf32>
    %260 = arith.divf %258, %259 : vector<2x32xf32>
    %261 = vector.extract_strided_slice %248 {offsets = [0, 32], sizes = [2, 32], strides = [1, 1]} : vector<2x96xf32> to vector<2x32xf32>
    %262 = vector.extract_strided_slice %251 {offsets = [0, 32], sizes = [2, 32], strides = [1, 1]} : vector<2x96xf32> to vector<2x32xf32>
    %263 = arith.addf %261, %262 : vector<2x32xf32>
    %264 = arith.negf %263 : vector<2x32xf32>
    %265 = math.exp %264 : vector<2x32xf32>
    %cst_42 = arith.constant 1.000000e+00 : f32
    %266 = vector.broadcast %cst_42 : f32 to vector<2x32xf32>
    %267 = arith.addf %266, %265 : vector<2x32xf32>
    %268 = arith.divf %266, %267 : vector<2x32xf32>
    %269 = vector.extract_strided_slice %248 {offsets = [0, 64], sizes = [2, 32], strides = [1, 1]} : vector<2x96xf32> to vector<2x32xf32>
    %270 = vector.extract_strided_slice %251 {offsets = [0, 64], sizes = [2, 32], strides = [1, 1]} : vector<2x96xf32> to vector<2x32xf32>
    %271 = arith.mulf %260, %270 : vector<2x32xf32>
    %272 = arith.addf %269, %271 : vector<2x32xf32>
    %273 = math.tanh %272 : vector<2x32xf32>
    %cst_43 = arith.constant 1.000000e+00 : f32
    %274 = vector.broadcast %cst_43 : f32 to vector<2x32xf32>
    %275 = arith.subf %274, %268 : vector<2x32xf32>
    %276 = arith.mulf %275, %273 : vector<2x32xf32>
    %277 = arith.mulf %268, %252 : vector<2x32xf32>
    %278 = arith.addf %276, %277 : vector<2x32xf32>
    %279 = vector.extract_strided_slice %56 {offsets = [3, 0], sizes = [1, 96], strides = [1, 1]} : vector<8x96xf32> to vector<1x96xf32>
    %280 = vector.extract_strided_slice %247 {offsets = [2, 96], sizes = [1, 96], strides = [1, 1]} : vector<3x192xf32> to vector<1x96xf32>
    %281 = arith.addf %280, %7 : vector<1x96xf32>
    %282 = vector.extract_strided_slice %246 {offsets = [2, 0], sizes = [1, 32], strides = [1, 1]} : vector<3x32xf32> to vector<1x32xf32>
    %283 = vector.extract_strided_slice %279 {offsets = [0, 0], sizes = [1, 32], strides = [1, 1]} : vector<1x96xf32> to vector<1x32xf32>
    %284 = vector.extract_strided_slice %281 {offsets = [0, 0], sizes = [1, 32], strides = [1, 1]} : vector<1x96xf32> to vector<1x32xf32>
    %285 = arith.addf %283, %284 : vector<1x32xf32>
    %286 = arith.negf %285 : vector<1x32xf32>
    %287 = math.exp %286 : vector<1x32xf32>
    %cst_44 = arith.constant 1.000000e+00 : f32
    %288 = vector.broadcast %cst_44 : f32 to vector<1x32xf32>
    %289 = arith.addf %288, %287 : vector<1x32xf32>
    %290 = arith.divf %288, %289 : vector<1x32xf32>
    %291 = vector.extract_strided_slice %279 {offsets = [0, 32], sizes = [1, 32], strides = [1, 1]} : vector<1x96xf32> to vector<1x32xf32>
    %292 = vector.extract_strided_slice %281 {offsets = [0, 32], sizes = [1, 32], strides = [1, 1]} : vector<1x96xf32> to vector<1x32xf32>
    %293 = arith.addf %291, %292 : vector<1x32xf32>
    %294 = arith.negf %293 : vector<1x32xf32>
    %295 = math.exp %294 : vector<1x32xf32>
    %cst_45 = arith.constant 1.000000e+00 : f32
    %296 = vector.broadcast %cst_45 : f32 to vector<1x32xf32>
    %297 = arith.addf %296, %295 : vector<1x32xf32>
    %298 = arith.divf %296, %297 : vector<1x32xf32>
    %299 = vector.extract_strided_slice %279 {offsets = [0, 64], sizes = [1, 32], strides = [1, 1]} : vector<1x96xf32> to vector<1x32xf32>
    %300 = vector.extract_strided_slice %281 {offsets = [0, 64], sizes = [1, 32], strides = [1, 1]} : vector<1x96xf32> to vector<1x32xf32>
    %301 = arith.mulf %290, %300 : vector<1x32xf32>
    %302 = arith.addf %299, %301 : vector<1x32xf32>
    %303 = math.tanh %302 : vector<1x32xf32>
    %cst_46 = arith.constant 1.000000e+00 : f32
    %304 = vector.broadcast %cst_46 : f32 to vector<1x32xf32>
    %305 = arith.subf %304, %298 : vector<1x32xf32>
    %306 = arith.mulf %305, %303 : vector<1x32xf32>
    %307 = arith.mulf %298, %282 : vector<1x32xf32>
    %308 = arith.addf %306, %307 : vector<1x32xf32>
    %309 = tpu.concatenate %278, %308 in 0 : vector<2x32xf32>, vector<1x32xf32> -> vector<3x32xf32>
    %cst_47 = arith.constant dense<0.000000e+00> : vector<3x192xf32>
    %310 = tpu.matmul %309, %47, %cst_47 {dimension_numbers = #tpu.dot_dimension_numbers<[1], [0], [0], [1], [0, 0, 1, 1], [], []>} : vector<3x32xf32>, vector<32x192xf32>, vector<3x192xf32> -> vector<3x192xf32>
    %311 = vector.extract_strided_slice %53 {offsets = [8, 0], sizes = [2, 96], strides = [1, 1]} : vector<16x96xf32> to vector<2x96xf32>
    %312 = vector.extract_strided_slice %310 {offsets = [0, 0], sizes = [2, 96], strides = [1, 1]} : vector<3x192xf32> to vector<2x96xf32>
    %313 = vector.broadcast %5 : vector<1x96xf32> to vector<2x96xf32>
    %314 = arith.addf %312, %313 : vector<2x96xf32>
    %315 = vector.extract_strided_slice %309 {offsets = [0, 0], sizes = [2, 32], strides = [1, 1]} : vector<3x32xf32> to vector<2x32xf32>
    %316 = vector.extract_strided_slice %311 {offsets = [0, 0], sizes = [2, 32], strides = [1, 1]} : vector<2x96xf32> to vector<2x32xf32>
    %317 = vector.extract_strided_slice %314 {offsets = [0, 0], sizes = [2, 32], strides = [1, 1]} : vector<2x96xf32> to vector<2x32xf32>
    %318 = arith.addf %316, %317 : vector<2x32xf32>
    %319 = arith.negf %318 : vector<2x32xf32>
    %320 = math.exp %319 : vector<2x32xf32>
    %cst_48 = arith.constant 1.000000e+00 : f32
    %321 = vector.broadcast %cst_48 : f32 to vector<2x32xf32>
    %322 = arith.addf %321, %320 : vector<2x32xf32>
    %323 = arith.divf %321, %322 : vector<2x32xf32>
    %324 = vector.extract_strided_slice %311 {offsets = [0, 32], sizes = [2, 32], strides = [1, 1]} : vector<2x96xf32> to vector<2x32xf32>
    %325 = vector.extract_strided_slice %314 {offsets = [0, 32], sizes = [2, 32], strides = [1, 1]} : vector<2x96xf32> to vector<2x32xf32>
    %326 = arith.addf %324, %325 : vector<2x32xf32>
    %327 = arith.negf %326 : vector<2x32xf32>
    %328 = math.exp %327 : vector<2x32xf32>
    %cst_49 = arith.constant 1.000000e+00 : f32
    %329 = vector.broadcast %cst_49 : f32 to vector<2x32xf32>
    %330 = arith.addf %329, %328 : vector<2x32xf32>
    %331 = arith.divf %329, %330 : vector<2x32xf32>
    %332 = vector.extract_strided_slice %311 {offsets = [0, 64], sizes = [2, 32], strides = [1, 1]} : vector<2x96xf32> to vector<2x32xf32>
    %333 = vector.extract_strided_slice %314 {offsets = [0, 64], sizes = [2, 32], strides = [1, 1]} : vector<2x96xf32> to vector<2x32xf32>
    %334 = arith.mulf %323, %333 : vector<2x32xf32>
    %335 = arith.addf %332, %334 : vector<2x32xf32>
    %336 = math.tanh %335 : vector<2x32xf32>
    %cst_50 = arith.constant 1.000000e+00 : f32
    %337 = vector.broadcast %cst_50 : f32 to vector<2x32xf32>
    %338 = arith.subf %337, %331 : vector<2x32xf32>
    %339 = arith.mulf %338, %336 : vector<2x32xf32>
    %340 = arith.mulf %331, %315 : vector<2x32xf32>
    %341 = arith.addf %339, %340 : vector<2x32xf32>
    %342 = vector.extract_strided_slice %56 {offsets = [4, 0], sizes = [1, 96], strides = [1, 1]} : vector<8x96xf32> to vector<1x96xf32>
    %343 = vector.extract_strided_slice %310 {offsets = [2, 96], sizes = [1, 96], strides = [1, 1]} : vector<3x192xf32> to vector<1x96xf32>
    %344 = arith.addf %343, %7 : vector<1x96xf32>
    %345 = vector.extract_strided_slice %309 {offsets = [2, 0], sizes = [1, 32], strides = [1, 1]} : vector<3x32xf32> to vector<1x32xf32>
    %346 = vector.extract_strided_slice %342 {offsets = [0, 0], sizes = [1, 32], strides = [1, 1]} : vector<1x96xf32> to vector<1x32xf32>
    %347 = vector.extract_strided_slice %344 {offsets = [0, 0], sizes = [1, 32], strides = [1, 1]} : vector<1x96xf32> to vector<1x32xf32>
    %348 = arith.addf %346, %347 : vector<1x32xf32>
    %349 = arith.negf %348 : vector<1x32xf32>
    %350 = math.exp %349 : vector<1x32xf32>
    %cst_51 = arith.constant 1.000000e+00 : f32
    %351 = vector.broadcast %cst_51 : f32 to vector<1x32xf32>
    %352 = arith.addf %351, %350 : vector<1x32xf32>
    %353 = arith.divf %351, %352 : vector<1x32xf32>
    %354 = vector.extract_strided_slice %342 {offsets = [0, 32], sizes = [1, 32], strides = [1, 1]} : vector<1x96xf32> to vector<1x32xf32>
    %355 = vector.extract_strided_slice %344 {offsets = [0, 32], sizes = [1, 32], strides = [1, 1]} : vector<1x96xf32> to vector<1x32xf32>
    %356 = arith.addf %354, %355 : vector<1x32xf32>
    %357 = arith.negf %356 : vector<1x32xf32>
    %358 = math.exp %357 : vector<1x32xf32>
    %cst_52 = arith.constant 1.000000e+00 : f32
    %359 = vector.broadcast %cst_52 : f32 to vector<1x32xf32>
    %360 = arith.addf %359, %358 : vector<1x32xf32>
    %361 = arith.divf %359, %360 : vector<1x32xf32>
    %362 = vector.extract_strided_slice %342 {offsets = [0, 64], sizes = [1, 32], strides = [1, 1]} : vector<1x96xf32> to vector<1x32xf32>
    %363 = vector.extract_strided_slice %344 {offsets = [0, 64], sizes = [1, 32], strides = [1, 1]} : vector<1x96xf32> to vector<1x32xf32>
    %364 = arith.mulf %353, %363 : vector<1x32xf32>
    %365 = arith.addf %362, %364 : vector<1x32xf32>
    %366 = math.tanh %365 : vector<1x32xf32>
    %cst_53 = arith.constant 1.000000e+00 : f32
    %367 = vector.broadcast %cst_53 : f32 to vector<1x32xf32>
    %368 = arith.subf %367, %361 : vector<1x32xf32>
    %369 = arith.mulf %368, %366 : vector<1x32xf32>
    %370 = arith.mulf %361, %345 : vector<1x32xf32>
    %371 = arith.addf %369, %370 : vector<1x32xf32>
    %372 = tpu.concatenate %341, %371 in 0 : vector<2x32xf32>, vector<1x32xf32> -> vector<3x32xf32>
    %cst_54 = arith.constant dense<0.000000e+00> : vector<3x192xf32>
    %373 = tpu.matmul %372, %47, %cst_54 {dimension_numbers = #tpu.dot_dimension_numbers<[1], [0], [0], [1], [0, 0, 1, 1], [], []>} : vector<3x32xf32>, vector<32x192xf32>, vector<3x192xf32> -> vector<3x192xf32>
    %374 = vector.extract_strided_slice %53 {offsets = [10, 0], sizes = [2, 96], strides = [1, 1]} : vector<16x96xf32> to vector<2x96xf32>
    %375 = vector.extract_strided_slice %373 {offsets = [0, 0], sizes = [2, 96], strides = [1, 1]} : vector<3x192xf32> to vector<2x96xf32>
    %376 = vector.broadcast %5 : vector<1x96xf32> to vector<2x96xf32>
    %377 = arith.addf %375, %376 : vector<2x96xf32>
    %378 = vector.extract_strided_slice %372 {offsets = [0, 0], sizes = [2, 32], strides = [1, 1]} : vector<3x32xf32> to vector<2x32xf32>
    %379 = vector.extract_strided_slice %374 {offsets = [0, 0], sizes = [2, 32], strides = [1, 1]} : vector<2x96xf32> to vector<2x32xf32>
    %380 = vector.extract_strided_slice %377 {offsets = [0, 0], sizes = [2, 32], strides = [1, 1]} : vector<2x96xf32> to vector<2x32xf32>
    %381 = arith.addf %379, %380 : vector<2x32xf32>
    %382 = arith.negf %381 : vector<2x32xf32>
    %383 = math.exp %382 : vector<2x32xf32>
    %cst_55 = arith.constant 1.000000e+00 : f32
    %384 = vector.broadcast %cst_55 : f32 to vector<2x32xf32>
    %385 = arith.addf %384, %383 : vector<2x32xf32>
    %386 = arith.divf %384, %385 : vector<2x32xf32>
    %387 = vector.extract_strided_slice %374 {offsets = [0, 32], sizes = [2, 32], strides = [1, 1]} : vector<2x96xf32> to vector<2x32xf32>
    %388 = vector.extract_strided_slice %377 {offsets = [0, 32], sizes = [2, 32], strides = [1, 1]} : vector<2x96xf32> to vector<2x32xf32>
    %389 = arith.addf %387, %388 : vector<2x32xf32>
    %390 = arith.negf %389 : vector<2x32xf32>
    %391 = math.exp %390 : vector<2x32xf32>
    %cst_56 = arith.constant 1.000000e+00 : f32
    %392 = vector.broadcast %cst_56 : f32 to vector<2x32xf32>
    %393 = arith.addf %392, %391 : vector<2x32xf32>
    %394 = arith.divf %392, %393 : vector<2x32xf32>
    %395 = vector.extract_strided_slice %374 {offsets = [0, 64], sizes = [2, 32], strides = [1, 1]} : vector<2x96xf32> to vector<2x32xf32>
    %396 = vector.extract_strided_slice %377 {offsets = [0, 64], sizes = [2, 32], strides = [1, 1]} : vector<2x96xf32> to vector<2x32xf32>
    %397 = arith.mulf %386, %396 : vector<2x32xf32>
    %398 = arith.addf %395, %397 : vector<2x32xf32>
    %399 = math.tanh %398 : vector<2x32xf32>
    %cst_57 = arith.constant 1.000000e+00 : f32
    %400 = vector.broadcast %cst_57 : f32 to vector<2x32xf32>
    %401 = arith.subf %400, %394 : vector<2x32xf32>
    %402 = arith.mulf %401, %399 : vector<2x32xf32>
    %403 = arith.mulf %394, %378 : vector<2x32xf32>
    %404 = arith.addf %402, %403 : vector<2x32xf32>
    %405 = vector.extract_strided_slice %56 {offsets = [5, 0], sizes = [1, 96], strides = [1, 1]} : vector<8x96xf32> to vector<1x96xf32>
    %406 = vector.extract_strided_slice %373 {offsets = [2, 96], sizes = [1, 96], strides = [1, 1]} : vector<3x192xf32> to vector<1x96xf32>
    %407 = arith.addf %406, %7 : vector<1x96xf32>
    %408 = vector.extract_strided_slice %372 {offsets = [2, 0], sizes = [1, 32], strides = [1, 1]} : vector<3x32xf32> to vector<1x32xf32>
    %409 = vector.extract_strided_slice %405 {offsets = [0, 0], sizes = [1, 32], strides = [1, 1]} : vector<1x96xf32> to vector<1x32xf32>
    %410 = vector.extract_strided_slice %407 {offsets = [0, 0], sizes = [1, 32], strides = [1, 1]} : vector<1x96xf32> to vector<1x32xf32>
    %411 = arith.addf %409, %410 : vector<1x32xf32>
    %412 = arith.negf %411 : vector<1x32xf32>
    %413 = math.exp %412 : vector<1x32xf32>
    %cst_58 = arith.constant 1.000000e+00 : f32
    %414 = vector.broadcast %cst_58 : f32 to vector<1x32xf32>
    %415 = arith.addf %414, %413 : vector<1x32xf32>
    %416 = arith.divf %414, %415 : vector<1x32xf32>
    %417 = vector.extract_strided_slice %405 {offsets = [0, 32], sizes = [1, 32], strides = [1, 1]} : vector<1x96xf32> to vector<1x32xf32>
    %418 = vector.extract_strided_slice %407 {offsets = [0, 32], sizes = [1, 32], strides = [1, 1]} : vector<1x96xf32> to vector<1x32xf32>
    %419 = arith.addf %417, %418 : vector<1x32xf32>
    %420 = arith.negf %419 : vector<1x32xf32>
    %421 = math.exp %420 : vector<1x32xf32>
    %cst_59 = arith.constant 1.000000e+00 : f32
    %422 = vector.broadcast %cst_59 : f32 to vector<1x32xf32>
    %423 = arith.addf %422, %421 : vector<1x32xf32>
    %424 = arith.divf %422, %423 : vector<1x32xf32>
    %425 = vector.extract_strided_slice %405 {offsets = [0, 64], sizes = [1, 32], strides = [1, 1]} : vector<1x96xf32> to vector<1x32xf32>
    %426 = vector.extract_strided_slice %407 {offsets = [0, 64], sizes = [1, 32], strides = [1, 1]} : vector<1x96xf32> to vector<1x32xf32>
    %427 = arith.mulf %416, %426 : vector<1x32xf32>
    %428 = arith.addf %425, %427 : vector<1x32xf32>
    %429 = math.tanh %428 : vector<1x32xf32>
    %cst_60 = arith.constant 1.000000e+00 : f32
    %430 = vector.broadcast %cst_60 : f32 to vector<1x32xf32>
    %431 = arith.subf %430, %424 : vector<1x32xf32>
    %432 = arith.mulf %431, %429 : vector<1x32xf32>
    %433 = arith.mulf %424, %408 : vector<1x32xf32>
    %434 = arith.addf %432, %433 : vector<1x32xf32>
    %435 = tpu.concatenate %404, %434 in 0 : vector<2x32xf32>, vector<1x32xf32> -> vector<3x32xf32>
    %cst_61 = arith.constant dense<0.000000e+00> : vector<3x192xf32>
    %436 = tpu.matmul %435, %47, %cst_61 {dimension_numbers = #tpu.dot_dimension_numbers<[1], [0], [0], [1], [0, 0, 1, 1], [], []>} : vector<3x32xf32>, vector<32x192xf32>, vector<3x192xf32> -> vector<3x192xf32>
    %437 = vector.extract_strided_slice %53 {offsets = [12, 0], sizes = [2, 96], strides = [1, 1]} : vector<16x96xf32> to vector<2x96xf32>
    %438 = vector.extract_strided_slice %436 {offsets = [0, 0], sizes = [2, 96], strides = [1, 1]} : vector<3x192xf32> to vector<2x96xf32>
    %439 = vector.broadcast %5 : vector<1x96xf32> to vector<2x96xf32>
    %440 = arith.addf %438, %439 : vector<2x96xf32>
    %441 = vector.extract_strided_slice %435 {offsets = [0, 0], sizes = [2, 32], strides = [1, 1]} : vector<3x32xf32> to vector<2x32xf32>
    %442 = vector.extract_strided_slice %437 {offsets = [0, 0], sizes = [2, 32], strides = [1, 1]} : vector<2x96xf32> to vector<2x32xf32>
    %443 = vector.extract_strided_slice %440 {offsets = [0, 0], sizes = [2, 32], strides = [1, 1]} : vector<2x96xf32> to vector<2x32xf32>
    %444 = arith.addf %442, %443 : vector<2x32xf32>
    %445 = arith.negf %444 : vector<2x32xf32>
    %446 = math.exp %445 : vector<2x32xf32>
    %cst_62 = arith.constant 1.000000e+00 : f32
    %447 = vector.broadcast %cst_62 : f32 to vector<2x32xf32>
    %448 = arith.addf %447, %446 : vector<2x32xf32>
    %449 = arith.divf %447, %448 : vector<2x32xf32>
    %450 = vector.extract_strided_slice %437 {offsets = [0, 32], sizes = [2, 32], strides = [1, 1]} : vector<2x96xf32> to vector<2x32xf32>
    %451 = vector.extract_strided_slice %440 {offsets = [0, 32], sizes = [2, 32], strides = [1, 1]} : vector<2x96xf32> to vector<2x32xf32>
    %452 = arith.addf %450, %451 : vector<2x32xf32>
    %453 = arith.negf %452 : vector<2x32xf32>
    %454 = math.exp %453 : vector<2x32xf32>
    %cst_63 = arith.constant 1.000000e+00 : f32
    %455 = vector.broadcast %cst_63 : f32 to vector<2x32xf32>
    %456 = arith.addf %455, %454 : vector<2x32xf32>
    %457 = arith.divf %455, %456 : vector<2x32xf32>
    %458 = vector.extract_strided_slice %437 {offsets = [0, 64], sizes = [2, 32], strides = [1, 1]} : vector<2x96xf32> to vector<2x32xf32>
    %459 = vector.extract_strided_slice %440 {offsets = [0, 64], sizes = [2, 32], strides = [1, 1]} : vector<2x96xf32> to vector<2x32xf32>
    %460 = arith.mulf %449, %459 : vector<2x32xf32>
    %461 = arith.addf %458, %460 : vector<2x32xf32>
    %462 = math.tanh %461 : vector<2x32xf32>
    %cst_64 = arith.constant 1.000000e+00 : f32
    %463 = vector.broadcast %cst_64 : f32 to vector<2x32xf32>
    %464 = arith.subf %463, %457 : vector<2x32xf32>
    %465 = arith.mulf %464, %462 : vector<2x32xf32>
    %466 = arith.mulf %457, %441 : vector<2x32xf32>
    %467 = arith.addf %465, %466 : vector<2x32xf32>
    %468 = vector.extract_strided_slice %56 {offsets = [6, 0], sizes = [1, 96], strides = [1, 1]} : vector<8x96xf32> to vector<1x96xf32>
    %469 = vector.extract_strided_slice %436 {offsets = [2, 96], sizes = [1, 96], strides = [1, 1]} : vector<3x192xf32> to vector<1x96xf32>
    %470 = arith.addf %469, %7 : vector<1x96xf32>
    %471 = vector.extract_strided_slice %435 {offsets = [2, 0], sizes = [1, 32], strides = [1, 1]} : vector<3x32xf32> to vector<1x32xf32>
    %472 = vector.extract_strided_slice %468 {offsets = [0, 0], sizes = [1, 32], strides = [1, 1]} : vector<1x96xf32> to vector<1x32xf32>
    %473 = vector.extract_strided_slice %470 {offsets = [0, 0], sizes = [1, 32], strides = [1, 1]} : vector<1x96xf32> to vector<1x32xf32>
    %474 = arith.addf %472, %473 : vector<1x32xf32>
    %475 = arith.negf %474 : vector<1x32xf32>
    %476 = math.exp %475 : vector<1x32xf32>
    %cst_65 = arith.constant 1.000000e+00 : f32
    %477 = vector.broadcast %cst_65 : f32 to vector<1x32xf32>
    %478 = arith.addf %477, %476 : vector<1x32xf32>
    %479 = arith.divf %477, %478 : vector<1x32xf32>
    %480 = vector.extract_strided_slice %468 {offsets = [0, 32], sizes = [1, 32], strides = [1, 1]} : vector<1x96xf32> to vector<1x32xf32>
    %481 = vector.extract_strided_slice %470 {offsets = [0, 32], sizes = [1, 32], strides = [1, 1]} : vector<1x96xf32> to vector<1x32xf32>
    %482 = arith.addf %480, %481 : vector<1x32xf32>
    %483 = arith.negf %482 : vector<1x32xf32>
    %484 = math.exp %483 : vector<1x32xf32>
    %cst_66 = arith.constant 1.000000e+00 : f32
    %485 = vector.broadcast %cst_66 : f32 to vector<1x32xf32>
    %486 = arith.addf %485, %484 : vector<1x32xf32>
    %487 = arith.divf %485, %486 : vector<1x32xf32>
    %488 = vector.extract_strided_slice %468 {offsets = [0, 64], sizes = [1, 32], strides = [1, 1]} : vector<1x96xf32> to vector<1x32xf32>
    %489 = vector.extract_strided_slice %470 {offsets = [0, 64], sizes = [1, 32], strides = [1, 1]} : vector<1x96xf32> to vector<1x32xf32>
    %490 = arith.mulf %479, %489 : vector<1x32xf32>
    %491 = arith.addf %488, %490 : vector<1x32xf32>
    %492 = math.tanh %491 : vector<1x32xf32>
    %cst_67 = arith.constant 1.000000e+00 : f32
    %493 = vector.broadcast %cst_67 : f32 to vector<1x32xf32>
    %494 = arith.subf %493, %487 : vector<1x32xf32>
    %495 = arith.mulf %494, %492 : vector<1x32xf32>
    %496 = arith.mulf %487, %471 : vector<1x32xf32>
    %497 = arith.addf %495, %496 : vector<1x32xf32>
    %498 = tpu.concatenate %467, %497 in 0 : vector<2x32xf32>, vector<1x32xf32> -> vector<3x32xf32>
    %cst_68 = arith.constant dense<0.000000e+00> : vector<3x192xf32>
    %499 = tpu.matmul %498, %47, %cst_68 {dimension_numbers = #tpu.dot_dimension_numbers<[1], [0], [0], [1], [0, 0, 1, 1], [], []>} : vector<3x32xf32>, vector<32x192xf32>, vector<3x192xf32> -> vector<3x192xf32>
    %500 = vector.extract_strided_slice %53 {offsets = [14, 0], sizes = [2, 96], strides = [1, 1]} : vector<16x96xf32> to vector<2x96xf32>
    %501 = vector.extract_strided_slice %499 {offsets = [0, 0], sizes = [2, 96], strides = [1, 1]} : vector<3x192xf32> to vector<2x96xf32>
    %502 = vector.broadcast %5 : vector<1x96xf32> to vector<2x96xf32>
    %503 = arith.addf %501, %502 : vector<2x96xf32>
    %504 = vector.extract_strided_slice %498 {offsets = [0, 0], sizes = [2, 32], strides = [1, 1]} : vector<3x32xf32> to vector<2x32xf32>
    %505 = vector.extract_strided_slice %500 {offsets = [0, 0], sizes = [2, 32], strides = [1, 1]} : vector<2x96xf32> to vector<2x32xf32>
    %506 = vector.extract_strided_slice %503 {offsets = [0, 0], sizes = [2, 32], strides = [1, 1]} : vector<2x96xf32> to vector<2x32xf32>
    %507 = arith.addf %505, %506 : vector<2x32xf32>
    %508 = arith.negf %507 : vector<2x32xf32>
    %509 = math.exp %508 : vector<2x32xf32>
    %cst_69 = arith.constant 1.000000e+00 : f32
    %510 = vector.broadcast %cst_69 : f32 to vector<2x32xf32>
    %511 = arith.addf %510, %509 : vector<2x32xf32>
    %512 = arith.divf %510, %511 : vector<2x32xf32>
    %513 = vector.extract_strided_slice %500 {offsets = [0, 32], sizes = [2, 32], strides = [1, 1]} : vector<2x96xf32> to vector<2x32xf32>
    %514 = vector.extract_strided_slice %503 {offsets = [0, 32], sizes = [2, 32], strides = [1, 1]} : vector<2x96xf32> to vector<2x32xf32>
    %515 = arith.addf %513, %514 : vector<2x32xf32>
    %516 = arith.negf %515 : vector<2x32xf32>
    %517 = math.exp %516 : vector<2x32xf32>
    %cst_70 = arith.constant 1.000000e+00 : f32
    %518 = vector.broadcast %cst_70 : f32 to vector<2x32xf32>
    %519 = arith.addf %518, %517 : vector<2x32xf32>
    %520 = arith.divf %518, %519 : vector<2x32xf32>
    %521 = vector.extract_strided_slice %500 {offsets = [0, 64], sizes = [2, 32], strides = [1, 1]} : vector<2x96xf32> to vector<2x32xf32>
    %522 = vector.extract_strided_slice %503 {offsets = [0, 64], sizes = [2, 32], strides = [1, 1]} : vector<2x96xf32> to vector<2x32xf32>
    %523 = arith.mulf %512, %522 : vector<2x32xf32>
    %524 = arith.addf %521, %523 : vector<2x32xf32>
    %525 = math.tanh %524 : vector<2x32xf32>
    %cst_71 = arith.constant 1.000000e+00 : f32
    %526 = vector.broadcast %cst_71 : f32 to vector<2x32xf32>
    %527 = arith.subf %526, %520 : vector<2x32xf32>
    %528 = arith.mulf %527, %525 : vector<2x32xf32>
    %529 = arith.mulf %520, %504 : vector<2x32xf32>
    %530 = arith.addf %528, %529 : vector<2x32xf32>
    %531 = vector.extract_strided_slice %56 {offsets = [7, 0], sizes = [1, 96], strides = [1, 1]} : vector<8x96xf32> to vector<1x96xf32>
    %532 = vector.extract_strided_slice %499 {offsets = [2, 96], sizes = [1, 96], strides = [1, 1]} : vector<3x192xf32> to vector<1x96xf32>
    %533 = arith.addf %532, %7 : vector<1x96xf32>
    %534 = vector.extract_strided_slice %498 {offsets = [2, 0], sizes = [1, 32], strides = [1, 1]} : vector<3x32xf32> to vector<1x32xf32>
    %535 = vector.extract_strided_slice %531 {offsets = [0, 0], sizes = [1, 32], strides = [1, 1]} : vector<1x96xf32> to vector<1x32xf32>
    %536 = vector.extract_strided_slice %533 {offsets = [0, 0], sizes = [1, 32], strides = [1, 1]} : vector<1x96xf32> to vector<1x32xf32>
    %537 = arith.addf %535, %536 : vector<1x32xf32>
    %538 = arith.negf %537 : vector<1x32xf32>
    %539 = math.exp %538 : vector<1x32xf32>
    %cst_72 = arith.constant 1.000000e+00 : f32
    %540 = vector.broadcast %cst_72 : f32 to vector<1x32xf32>
    %541 = arith.addf %540, %539 : vector<1x32xf32>
    %542 = arith.divf %540, %541 : vector<1x32xf32>
    %543 = vector.extract_strided_slice %531 {offsets = [0, 32], sizes = [1, 32], strides = [1, 1]} : vector<1x96xf32> to vector<1x32xf32>
    %544 = vector.extract_strided_slice %533 {offsets = [0, 32], sizes = [1, 32], strides = [1, 1]} : vector<1x96xf32> to vector<1x32xf32>
    %545 = arith.addf %543, %544 : vector<1x32xf32>
    %546 = arith.negf %545 : vector<1x32xf32>
    %547 = math.exp %546 : vector<1x32xf32>
    %cst_73 = arith.constant 1.000000e+00 : f32
    %548 = vector.broadcast %cst_73 : f32 to vector<1x32xf32>
    %549 = arith.addf %548, %547 : vector<1x32xf32>
    %550 = arith.divf %548, %549 : vector<1x32xf32>
    %551 = vector.extract_strided_slice %531 {offsets = [0, 64], sizes = [1, 32], strides = [1, 1]} : vector<1x96xf32> to vector<1x32xf32>
    %552 = vector.extract_strided_slice %533 {offsets = [0, 64], sizes = [1, 32], strides = [1, 1]} : vector<1x96xf32> to vector<1x32xf32>
    %553 = arith.mulf %542, %552 : vector<1x32xf32>
    %554 = arith.addf %551, %553 : vector<1x32xf32>
    %555 = math.tanh %554 : vector<1x32xf32>
    %cst_74 = arith.constant 1.000000e+00 : f32
    %556 = vector.broadcast %cst_74 : f32 to vector<1x32xf32>
    %557 = arith.subf %556, %550 : vector<1x32xf32>
    %558 = arith.mulf %557, %555 : vector<1x32xf32>
    %559 = arith.mulf %550, %534 : vector<1x32xf32>
    %560 = arith.addf %558, %559 : vector<1x32xf32>
    %561 = tpu.concatenate %530, %560 in 0 : vector<2x32xf32>, vector<1x32xf32> -> vector<3x32xf32>
    %c0_75 = arith.constant 0 : index
    %c0_76 = arith.constant 0 : index
    %562 = vector.load %arg3[%c0_75, %c0_76] : memref<32x12xf32, #tpu.memory_space<vmem>>, vector<32x12xf32>
    %cst_77 = arith.constant dense<0.000000e+00> : vector<3x12xf32>
    %563 = tpu.matmul %561, %562, %cst_77 {dimension_numbers = #tpu.dot_dimension_numbers<[1], [0], [0], [1], [0, 0, 1, 1], [], []>} : vector<3x32xf32>, vector<32x12xf32>, vector<3x12xf32> -> vector<3x12xf32>
    %564 = vector.extract_strided_slice %563 {offsets = [0, 0], sizes = [2, 4], strides = [1, 1]} : vector<3x12xf32> to vector<2x4xf32>
    %565 = vector.broadcast %8 : vector<1x4xf32> to vector<2x4xf32>
    %566 = arith.addf %564, %565 : vector<2x4xf32>
    %567 = vector.extract_strided_slice %563 {offsets = [2, 4], sizes = [1, 4], strides = [1, 1]} : vector<3x12xf32> to vector<1x4xf32>
    %568 = arith.addf %567, %9 : vector<1x4xf32>
    %569 = vector.extract_strided_slice %563 {offsets = [0, 8], sizes = [2, 4], strides = [1, 1]} : vector<3x12xf32> to vector<2x4xf32>
    %570 = vector.broadcast %568 : vector<1x4xf32> to vector<2x4xf32>
    %571 = arith.mulf %566, %570 : vector<2x4xf32>
    %cst_78 = arith.constant dense<0.000000e+00> : vector<2xf32>
    %572 = vector.multi_reduction <add>, %571, %cst_78 [1] : vector<2x4xf32> to vector<2xf32>
    %573 = vector.shape_cast %572 : vector<2xf32> to vector<2x1xf32>
    %574 = arith.mulf %566, %566 : vector<2x4xf32>
    %cst_79 = arith.constant dense<0.000000e+00> : vector<2xf32>
    %575 = vector.multi_reduction <add>, %574, %cst_79 [1] : vector<2x4xf32> to vector<2xf32>
    %576 = vector.shape_cast %575 : vector<2xf32> to vector<2x1xf32>
    %577 = arith.mulf %568, %568 : vector<1x4xf32>
    %cst_80 = arith.constant dense<0.000000e+00> : vector<1xf32>
    %578 = vector.multi_reduction <add>, %577, %cst_80 [1] : vector<1x4xf32> to vector<1xf32>
    %579 = vector.shape_cast %578 : vector<1xf32> to vector<1x1xf32>
    %580 = vector.broadcast %579 : vector<1x1xf32> to vector<2x1xf32>
    %581 = arith.mulf %576, %580 : vector<2x1xf32>
    %cst_81 = arith.constant 1.000000e-16 : f32
    %582 = vector.broadcast %cst_81 : f32 to vector<2x1xf32>
    %583 = arith.maximumf %581, %582 : vector<2x1xf32>
    %584 = math.rsqrt %583 : vector<2x1xf32>
    %585 = arith.mulf %573, %584 : vector<2x1xf32>
    %586 = vector.broadcast %585 : vector<2x1xf32> to vector<2x4xf32>
    %587 = arith.mulf %586, %569 : vector<2x4xf32>
    %588 = vector.broadcast %10 : vector<1x4xf32> to vector<2x4xf32>
    %589 = arith.addf %587, %588 : vector<2x4xf32>
    %c0_82 = arith.constant 0 : index
    %c0_83 = arith.constant 0 : index
    %590 = vector.load %arg6[%c0_82, %c0_83] : memref<2x4xf32, #tpu.memory_space<vmem>>, vector<2x4xf32>
    tpu.vector_store %arg6[%c0_82, %c0_83], %589 {strides = array<i32>} : memref<2x4xf32, #tpu.memory_space<vmem>>, vector<2x4xf32>,
    return
  }
}

</mosaic_0001>

<llo_original>
// kernel: memory_discriminator_forward.1
$region0: #{memory_discriminator_forward.1}
  #allocation0 [shape = 'u32[]', space=smem, size = 0x4, offset = 0x4, fixed_abs, tag = 'smem constant byte address 0x4 - core index']
  #allocation1 [shape = 'u32[144,128]{1,0:T(1,128)}', space=vmem, size = 0x12000, scoped, tag = 'internal scratch']
  %s0 = inlined_call_operand.vmem [shape: f32[16,16], index: 0, kind: input, shape index: {}]
  %s1 = inlined_call_operand.vmem [shape: f32[16,32], index: 1, kind: input, shape index: {}]
  %s2 = inlined_call_operand.vmem [shape: f32[2,32,192], index: 2, kind: input, shape index: {}]
  %s3 = inlined_call_operand.vmem [shape: f32[32,12], index: 3, kind: input, shape index: {}]
  %s4 = inlined_call_operand.vmem [shape: f32[8,32], index: 4, kind: input, shape index: {}]
  %s5 = inlined_call_operand.vmem [shape: f32[10,96], index: 5, kind: input, shape index: {}]
  %s6 = inlined_call_operand.hbm [shape: f32[2,4], index: 6, kind: output, shape index: {}]
  %s7 = sld [smem:[#allocation0]]
  $region34: #{memory_discriminator_forward.1} parent=0
    _
  %s9 = ssub.s32 1, %s7
  %s10 = scalar_select 0, %s9, %s7
  $region1: #{memory_discriminator_forward.1} parent=0
    #allocation2 [shape = 'u8[1024]{0}', space=vmem, size = 0x400, scoped, tag = 'output window, operand 0, single buffered']
    #allocation3 [shape = 's32[1]{0}', space=sflag, size = 0x4, scoped, tag = 'scoped memory for memory_discriminator_forward.1']
    %11 = vsyncpa [#allocation3], 0
    // Predicated region
    $region2: #{memory_discriminator_forward.1} parent=1 // pred_check
      _
    $region3: #{memory_discriminator_forward.1} parent=1 // pred_check_branch
      %13 = sbr.rel (0) target = $region5
    $region4: #{memory_discriminator_forward.1} parent=1 // pred_region
      _
    $region5: #{memory_discriminator_forward.1} parent=1 // pred_fallthru
      _
    // Predicated region
    $region6: #{memory_discriminator_forward.1} parent=1 // pred_check
      _
    $region7: #{memory_discriminator_forward.1} parent=1 // pred_check_branch
      %15 = sbr.rel (0) target = $region9
    $region8: #{memory_discriminator_forward.1} parent=1 // pred_region
      _
    $region9: #{memory_discriminator_forward.1} parent=1 // pred_fallthru
      _
    // Predicated region
    $region10: #{memory_discriminator_forward.1} parent=1 // pred_check
      _
    $region11: #{memory_discriminator_forward.1} parent=1 // pred_check_branch
      %17 = sbr.rel (0) target = $region13
    $region12: #{memory_discriminator_forward.1} parent=1 // pred_region
      _
    $region13: #{memory_discriminator_forward.1} parent=1 // pred_fallthru
      _
    // Predicated region
    $region14: #{memory_discriminator_forward.1} parent=1 // pred_check
      _
    $region15: #{memory_discriminator_forward.1} parent=1 // pred_check_branch
      %19 = sbr.rel (0) target = $region17
    $region16: #{memory_discriminator_forward.1} parent=1 // pred_region
      _
    $region17: #{memory_discriminator_forward.1} parent=1 // pred_fallthru
      _
    // Predicated region
    $region18: #{memory_discriminator_forward.1} parent=1 // pred_check
      _
    $region19: #{memory_discriminator_forward.1} parent=1 // pred_check_branch
      %21 = sbr.rel (0) target = $region21
    $region20: #{memory_discriminator_forward.1} parent=1 // pred_region
      _
    $region21: #{memory_discriminator_forward.1} parent=1 // pred_fallthru
      _
    // Predicated region
    $region22: #{memory_discriminator_forward.1} parent=1 // pred_check
      _
    $region23: #{memory_discriminator_forward.1} parent=1 // pred_check_branch
      %23 = sbr.rel (0) target = $region25
    $region24: #{memory_discriminator_forward.1} parent=1 // pred_region
      _
    $region25: #{memory_discriminator_forward.1} parent=1 // pred_fallthru
      _
    %v24 = vld [vmem:[%s5] sm:$0xff]
    %v25 = vld [vmem:[%s5 + $0x8] sm:$0x3]
    %v26 = vld [vmem:[%s0] sm:$0xff]
    %v27 = vld [vmem:[%s0 + $0x8] sm:$0xff]
    %v28 = vld [vmem:[%s1] sm:$0xff]
    %v29 = vld [vmem:[%s1 + $0x8] sm:$0xff]
    %v30 = vlaneseq
    %v31 = vshrl.u32 %v30, 7
    %v32 = vsub.s32 0, %v31
    %v33 = vrot.slane %v24, %v32
    %vm34 = vcmask 130048
    %v36 = vsel %vm34, %v26, 0
    %v39 = vsel %vm34, %v27, 0
    %41 = vmatprep.subr.mxu0 0.0
    %42 = vmatpush1.msra.mxu0 0.0
    %43 = vmatprep.subr.mxu0 0.0
    %44 = vmatpush1.msra.mxu0 0.0
    %45 = vmatprep.subr.mxu0 0.0
    %46 = vmatpush1.msra.mxu0 0.0
    %47 = vmatprep.subr.mxu0 0.0
    %48 = vmatpush1.msra.mxu0 0.0
    %49 = vmatprep.subr.mxu0 0.0
    %50 = vmatpush1.msra.mxu0 0.0
    %51 = vmatprep.subr.mxu0 0.0
    %52 = vmatpush1.msra.mxu0 0.0
    %53 = vmatprep.subr.mxu0 0.0
    %54 = vmatpush1.msra.mxu0 0.0
    %55 = vmatprep.subr.mxu0 0.0
    %56 = vmatpush1.msra.mxu0 0.0
    %57 = vmatprep.subr.mxu0 0.0
    %58 = vmatpush1.msra.mxu0 0.0
    %59 = vmatprep.subr.mxu0 0.0
    %60 = vmatpush1.msra.mxu0 0.0
    %61 = vmatprep.subr.mxu0 0.0
    %62 = vmatpush1.msra.mxu0 0.0
    %63 = vmatprep.subr.mxu0 0.0
    %64 = vmatpush1.msra.mxu0 0.0
    %65 = vmatprep.subr.mxu0 0.0
    %66 = vmatpush1.msra.mxu0 0.0
    %67 = vmatprep.subr.mxu0 0.0
    %68 = vmatpush1.msra.mxu0 0.0
    %69 = vmatprep.subr.mxu0 0.0
    %70 = vmatpush1.msra.mxu0 %v29
    %71 = vmatprep.subr.mxu0 0.0
    %72 = vmatpush1.msra.mxu0 %v28
    %73 = vmatprep.subr.mxu0 0.0
    %74 = vmatpush2.msra.mxu0 0.0
    %75 = vmatprep.subr.mxu0 0.0
    %76 = vmatpush2.msra.mxu0 0.0
    %77 = vmatprep.subr.mxu0 0.0
    %78 = vmatpush2.msra.mxu0 0.0
    %79 = vmatprep.subr.mxu0 0.0
    %80 = vmatpush2.msra.mxu0 0.0
    %81 = vmatprep.subr.mxu0 0.0
    %82 = vmatpush2.msra.mxu0 0.0
    %83 = vmatprep.subr.mxu0 0.0
    %84 = vmatpush2.msra.mxu0 0.0
    %85 = vmatprep.subr.mxu0 0.0
    %86 = vmatpush2.msra.mxu0 0.0
    %87 = vmatprep.subr.mxu0 0.0
    %88 = vmatpush2.msra.mxu0 0.0
    %89 = vmatprep.subr.mxu0 0.0
    %90 = vmatpush2.msra.mxu0 0.0
    %91 = vmatprep.subr.mxu0 0.0
    %92 = vmatpush2.msra.mxu0 0.0
    %93 = vmatprep.subr.mxu0 0.0
    %94 = vmatpush2.msra.mxu0 0.0
    %95 = vmatprep.subr.mxu0 0.0
    %96 = vmatpush2.msra.mxu0 0.0
    %97 = vmatprep.subr.mxu0 0.0
    %98 = vmatpush2.msra.mxu0 0.0
    %99 = vmatprep.subr.mxu0 0.0
    %100 = vmatpush2.msra.mxu0 0.0
    %101 = vmatprep.subr.mxu0 0.0
    %102 = vmatpush2.msra.mxu0 0.0
    %103 = vmatprep.subr.mxu0 0.0
    %104 = vmatpush2.msra.mxu0 0.0
    %105 = vmatprep.mubr.f32.mxu0 0.0
    %106 = vmatmul.mubr.f32.gmra.mxu0 %v36
    %v107 = vpop.f32.mrf.mxu0
    %v108 = vadd.f32 %v33, %v107
    %v109 = vpop.f32.mrf.mxu0
    %110 = vmatprep.mubr.f32.mxu0 0.0
    %111 = vmatmul.mubr.f32.gmra.mxu0 %v39
    %v112 = vpop.f32.mrf.mxu0
    %v113 = vadd.f32 %v33, %v112
    %v114 = vpop.f32.mrf.mxu0
    %115 = vdwg.mxu0
    %vm116 = vcmp.ge.f32.partialorder %v108, 0.0
    %vm117 = vcmp.ge.f32.partialorder %v113, 0.0
    %v118 = vmul.f32 %v108, 0.2
    %v119 = vmul.f32 %v113, 0.2
    %v120 = vsel %vm116, %v108, %v118
    %v121 = vsel %vm117, %v113, %v119
    %vm122 = vcmask 261120
    %v123 = vsel %vm122, %v120, 0.0
    %v124 = vsel %vm122, %v121, 0.0
    %v125 = vadd.f32 %v123, %v124
    %v126 = vrot.slane %v125, 4
    %v127 = vadd.f32 %v125, %v126
    %v128 = vrot.slane %v127, 2
    %v129 = vadd.f32 %v127, %v128
    %v130 = vrot.slane %v129, 1
    %v131 = vadd.f32 %v129, %v130
    %v132 = vrcp.pop 16.0
    %v133 = vmul.f32 %v131, %v132
    %v134 = vsub.f32 %v120, %v133
    %v135 = vsub.f32 %v121, %v133
    %v136 = vmul.f32 %v134, %v134
    %v137 = vmul.f32 %v135, %v135
    %v138 = vsel %vm122, %v136, 0.0
    %v139 = vsel %vm122, %v137, 0.0
    %v140 = vadd.f32 %v138, %v139
    %v141 = vrot.slane %v140, 4
    %v142 = vadd.f32 %v140, %v141
    %v143 = vrot.slane %v142, 2
    %v144 = vadd.f32 %v142, %v143
    %v145 = vrot.slane %v144, 1
    %v146 = vadd.f32 %v144, %v145
    %v147 = vmul.f32 %v146, %v132
    %v148 = vadd.f32 %v147, 1e-05
    %v149 = vrsqrt.pop %v148
    %v150 = vmul.f32 %v134, %v149
    %v151 = vmul.f32 %v135, %v149
    %v152 = vlaneseq
    %v153 = vshrl.u32 %v152, 7
    %v154 = vsub.s32 1, %v153
    %v155 = vrot.slane %v24, %v154
    %v156 = vmul.f32 %v150, %v155
    %v157 = vmul.f32 %v151, %v155
    %v158 = vlaneseq
    %v159 = vshrl.u32 %v158, 7
    %v160 = vsub.s32 2, %v159
    %v161 = vrot.slane %v24, %v160
    %v162 = vadd.f32 %v156, %v161
    %v163 = vadd.f32 %v157, %v161
    %v164 = vld [vmem:[%s2] sm:$0xff]
    %v165 = vld [vmem:[%s2 + $0x8] sm:$0xff]
    %v166 = vld [vmem:[%s2 + $0x10] sm:$0xff]
    %v167 = vld [vmem:[%s2 + $0x18] sm:$0xff]
    %v168 = vld [vmem:[%s2 + $0x20] sm:$0xff]
    %v169 = vld [vmem:[%s2 + $0x28] sm:$0xff]
    %v170 = vld [vmem:[%s2 + $0x30] sm:$0xff]
    %v171 = vld [vmem:[%s2 + $0x38] sm:$0xff]
    %v172 = vld [vmem:[%s2 + $0x40] sm:$0xff]
    %v173 = vld [vmem:[%s2 + $0x48] sm:$0xff]
    %v174 = vld [vmem:[%s2 + $0x50] sm:$0xff]
    %v175 = vld [vmem:[%s2 + $0x58] sm:$0xff]
    %v176 = vld [vmem:[%s2 + $0x60] sm:$0xff]
    %v177 = vld [vmem:[%s2 + $0x68] sm:$0xff]
    %v178 = vld [vmem:[%s2 + $0x70] sm:$0xff]
    %v179 = vld [vmem:[%s2 + $0x78] sm:$0xff]
    %v180 = vld [vmem:[%s4] sm:$0xff]
    %v182 = vsel %vm122, %v162, 0
    %v185 = vsel %vm122, %v163, 0
    %v188 = vsel %vm122, %v180, 0
    %190 = vmatprep.subr.mxu0 0.0
    %191 = vmatpush1.msra.mxu0 0.0
    %192 = vmatprep.subr.mxu0 0.0
    %193 = vmatpush1.msra.mxu0 0.0
    %194 = vmatprep.subr.mxu0 0.0
    %195 = vmatpush1.msra.mxu0 0.0
    %196 = vmatprep.subr.mxu0 0.0
    %197 = vmatpush1.msra.mxu0 0.0
    %198 = vmatprep.subr.mxu0 0.0
    %199 = vmatpush1.msra.mxu0 0.0
    %200 = vmatprep.subr.mxu0 0.0
    %201 = vmatpush1.msra.mxu0 0.0
    %202 = vmatprep.subr.mxu0 0.0
    %203 = vmatpush1.msra.mxu0 0.0
    %204 = vmatprep.subr.mxu0 0.0
    %205 = vmatpush1.msra.mxu0 0.0
    %206 = vmatprep.subr.mxu0 0.0
    %207 = vmatpush1.msra.mxu0 0.0
    %208 = vmatprep.subr.mxu0 0.0
    %209 = vmatpush1.msra.mxu0 0.0
    %210 = vmatprep.subr.mxu0 0.0
    %211 = vmatpush1.msra.mxu0 0.0
    %212 = vmatprep.subr.mxu0 0.0
    %213 = vmatpush1.msra.mxu0 0.0
    %214 = vmatprep.subr.mxu0 %v171
    %215 = vmatpush1.msra.mxu0 %v170
    %216 = vmatprep.subr.mxu0 %v169
    %217 = vmatpush1.msra.mxu0 %v168
    %218 = vmatprep.subr.mxu0 %v167
    %219 = vmatpush1.msra.mxu0 %v166
    %220 = vmatprep.subr.mxu0 %v165
    %221 = vmatpush1.msra.mxu0 %v164
    %222 = vmatprep.subr.mxu0 0.0
    %223 = vmatpush2.msra.mxu0 0.0
    %224 = vmatprep.subr.mxu0 0.0
    %225 = vmatpush2.msra.mxu0 0.0
    %226 = vmatprep.subr.mxu0 0.0
    %227 = vmatpush2.msra.mxu0 0.0
    %228 = vmatprep.subr.mxu0 0.0
    %229 = vmatpush2.msra.mxu0 0.0
    %230 = vmatprep.subr.mxu0 0.0
    %231 = vmatpush2.msra.mxu0 0.0
    %232 = vmatprep.subr.mxu0 0.0
    %233 = vmatpush2.msra.mxu0 0.0
    %234 = vmatprep.subr.mxu0 0.0
    %235 = vmatpush2.msra.mxu0 0.0
    %236 = vmatprep.subr.mxu0 0.0
    %237 = vmatpush2.msra.mxu0 0.0
    %238 = vmatprep.subr.mxu0 0.0
    %239 = vmatpush2.msra.mxu0 0.0
    %240 = vmatprep.subr.mxu0 0.0
    %241 = vmatpush2.msra.mxu0 0.0
    %242 = vmatprep.subr.mxu0 0.0
    %243 = vmatpush2.msra.mxu0 0.0
    %244 = vmatprep.subr.mxu0 0.0
    %245 = vmatpush2.msra.mxu0 0.0
    %246 = vmatprep.subr.mxu0 0.0
    %247 = vmatpush2.msra.mxu0 0.0
    %248 = vmatprep.subr.mxu0 0.0
    %249 = vmatpush2.msra.mxu0 0.0
    %250 = vmatprep.subr.mxu0 0.0
    %251 = vmatpush2.msra.mxu0 0.0
    %252 = vmatprep.subr.mxu0 0.0
    %253 = vmatpush2.msra.mxu0 0.0
    %254 = vmatprep.mubr.f32.mxu0 0.0
    %255 = vmatmul.mubr.f32.gmra.mxu0 %v182
    %v256 = vpop.f32.mrf.mxu0
    %v257 = vadd.f32 0.0, %v256
    %v258 = vpop.f32.mrf.mxu0
    %259 = vmatprep.mubr.f32.mxu0 0.0
    %260 = vmatmul.mubr.f32.gmra.mxu0 %v185
    %v261 = vpop.f32.mrf.mxu0
    %v262 = vadd.f32 0.0, %v261
    %v263 = vpop.f32.mrf.mxu0
    %264 = vmatprep.mubr.f32.mxu0 0.0
    %265 = vmatmul.mubr.f32.gmra.mxu0 %v188
    %v266 = vpop.f32.mrf.mxu0
    %v267 = vadd.f32 0.0, %v266
    %v268 = vpop.f32.mrf.mxu0
    %v269 = vadd.f32 0.0, %v268
    %270 = vdwg.mxu0
    %v271 = vlaneseq
    %v272 = vshrl.u32 %v271, 7
    %v273 = vsub.s32 3, %v272
    %v274 = vrot.slane %v24, %v273
    %v275 = vadd.f32 %v257, %v274
    %v276 = vadd.f32 %v262, %v274
    %v277 = vlaneseq
    %v278 = vshrl.u32 %v277, 7
    %v279 = vsub.s32 5, %v278
    %v280 = vrot.slane %v24, %v279
    %282 = vrot.lane.b32.xlu0 %v280, 96
    %v283 = vpop.permute.xlu0 %282
    %v285 = vadd.f32 %v267, %v283
    %v286 = vadd.f32 %v269, %v283
    %v288 = vsel %vm122, 0.0, 0
    %290 = vmatprep.subr.mxu0 0.0
    %291 = vmatpush1.msra.mxu0 0.0
    %292 = vmatprep.subr.mxu0 0.0
    %293 = vmatpush1.msra.mxu0 0.0
    %294 = vmatprep.subr.mxu0 0.0
    %295 = vmatpush1.msra.mxu0 0.0
    %296 = vmatprep.subr.mxu0 0.0
    %297 = vmatpush1.msra.mxu0 0.0
    %298 = vmatprep.subr.mxu0 0.0
    %299 = vmatpush1.msra.mxu0 0.0
    %300 = vmatprep.subr.mxu0 0.0
    %301 = vmatpush1.msra.mxu0 0.0
    %302 = vmatprep.subr.mxu0 0.0
    %303 = vmatpush1.msra.mxu0 0.0
    %304 = vmatprep.subr.mxu0 0.0
    %305 = vmatpush1.msra.mxu0 0.0
    %306 = vmatprep.subr.mxu0 0.0
    %307 = vmatpush1.msra.mxu0 0.0
    %308 = vmatprep.subr.mxu0 0.0
    %309 = vmatpush1.msra.mxu0 0.0
    %310 = vmatprep.subr.mxu0 0.0
    %311 = vmatpush1.msra.mxu0 0.0
    %312 = vmatprep.subr.mxu0 0.0
    %313 = vmatpush1.msra.mxu0 0.0
    %314 = vmatprep.subr.mxu0 %v179
    %315 = vmatpush1.msra.mxu0 %v178
    %316 = vmatprep.subr.mxu0 %v177
    %317 = vmatpush1.msra.mxu0 %v176
    %318 = vmatprep.subr.mxu0 %v175
    %319 = vmatpush1.msra.mxu0 %v174
    %320 = vmatprep.subr.mxu0 %v173
    %321 = vmatpush1.msra.mxu0 %v172
    %322 = vmatprep.subr.mxu0 0.0
    %323 = vmatpush2.msra.mxu0 0.0
    %324 = vmatprep.subr.mxu0 0.0
    %325 = vmatpush2.msra.mxu0 0.0
    %326 = vmatprep.subr.mxu0 0.0
    %327 = vmatpush2.msra.mxu0 0.0
    %328 = vmatprep.subr.mxu0 0.0
    %329 = vmatpush2.msra.mxu0 0.0
    %330 = vmatprep.subr.mxu0 0.0
    %331 = vmatpush2.msra.mxu0 0.0
    %332 = vmatprep.subr.mxu0 0.0
    %333 = vmatpush2.msra.mxu0 0.0
    %334 = vmatprep.subr.mxu0 0.0
    %335 = vmatpush2.msra.mxu0 0.0
    %336 = vmatprep.subr.mxu0 0.0
    %337 = vmatpush2.msra.mxu0 0.0
    %338 = vmatprep.subr.mxu0 0.0
    %339 = vmatpush2.msra.mxu0 0.0
    %340 = vmatprep.subr.mxu0 0.0
    %341 = vmatpush2.msra.mxu0 0.0
    %342 = vmatprep.subr.mxu0 0.0
    %343 = vmatpush2.msra.mxu0 0.0
    %344 = vmatprep.subr.mxu0 0.0
    %345 = vmatpush2.msra.mxu0 0.0
    %346 = vmatprep.subr.mxu0 0.0
    %347 = vmatpush2.msra.mxu0 0.0
    %348 = vmatprep.subr.mxu0 0.0
    %349 = vmatpush2.msra.mxu0 0.0
    %350 = vmatprep.subr.mxu0 0.0
    %351 = vmatpush2.msra.mxu0 0.0
    %352 = vmatprep.subr.mxu0 0.0
    %353 = vmatpush2.msra.mxu0 0.0
    %354 = vmatprep.mubr.f32.mxu0 0.0
    %355 = vmatmul.mubr.f32.gmra.mxu0 %v288
    %v356 = vpop.f32.mrf.mxu0
    %v357 = vadd.f32 0.0, %v356
    %v358 = vpop.f32.mrf.mxu0
    %v359 = vadd.f32 0.0, %v358
    %360 = vdwg.mxu0
    %v361 = vlaneseq
    %v362 = vshrl.u32 %v361, 7
    %v363 = vsub.s32 4, %v362
    %v364 = vrot.slane %v24, %v363
    %v365 = vadd.f32 %v357, %v364
    %v366 = vadd.f32 %v275, %v365
    %v367 = vxor.u32 %v366, 2147483648
    %v368 = vmul.f32 %v367, 1.442695
    %v369 = vpow.pop %v368
    %v370 = vadd.f32 %v369, 1.0
    %v371 = vrcp.pop %v370
    %v372 = vmul.f32 1.0, %v371
    %374 = vrot.lane.b32.xlu0 %v365, 64
    %v375 = vpop.permute.xlu0 %374
    %v377 = vmul.f32 %v372, %v375
    %379 = vrot.lane.b32.xlu0 %v377, 64
    %v380 = vpop.permute.xlu0 %379
    %v382 = vadd.f32 %v275, %v380
    %v383 = vtanh.pop %v382
    %v384 = vsub.f32 1.0, %v372
    %386 = vrot.lane.b32.xlu0 %v383, 96
    %v387 = vpop.permute.xlu0 %386
    %v389 = vmul.f32 %v384, %v387
    %v390 = vmul.f32 %v372, 0.0
    %v391 = vadd.f32 %v389, %v390
    %v393 = vrot.slane %v24, 4
    %394 = vrot.lane.b32.xlu0 %v393, 96
    %v395 = vpop.permute.xlu0 %394
    %v397 = vadd.f32 %v357, %v395
    %v398 = vadd.f32 %v359, %v395
    %v400 = vrot.slane %v397, 2
    %v402 = vadd.f32 %v285, %v400
    %v403 = vxor.u32 %v402, 2147483648
    %v404 = vmul.f32 %v403, 1.442695
    %v405 = vpow.pop %v404
    %v406 = vadd.f32 %v405, 1.0
    %v407 = vrcp.pop %v406
    %v408 = vmul.f32 1.0, %v407
    %v410 = vrot.slane %v398, 2
    %v412 = vadd.f32 %v286, %v410
    %v413 = vxor.u32 %v412, 2147483648
    %v414 = vmul.f32 %v413, 1.442695
    %v415 = vpow.pop %v414
    %v416 = vadd.f32 %v415, 1.0
    %v417 = vrcp.pop %v416
    %v418 = vmul.f32 1.0, %v417
    %419 = vrot.lane.b32.xlu0 %v410, 64
    %v420 = vpop.permute.xlu0 %419
    %v422 = vmul.f32 %v408, %v420
    %424 = vrot.lane.b32.xlu0 %v422, 64
    %v425 = vpop.permute.xlu0 %424
    %v427 = vadd.f32 %v286, %v425
    %v428 = vtanh.pop %v427
    %v429 = vsub.f32 1.0, %v418
    %431 = vrot.lane.b32.xlu0 %v428, 96
    %v432 = vpop.permute.xlu0 %431
    %v434 = vmul.f32 %v429, %v432
    %v435 = vmul.f32 %v418, 0.0
    %v436 = vadd.f32 %v434, %v435
    %v438 = vrot.slane %v436, 6
    %439 = vrot.lane.b32.xlu0 %v438, 32
    %v440 = vpop.permute.xlu0 %439
    %vm442 = vcmask 1041408
    %v443 = vsel %vm442, %v391, %v440
    %445 = vrot.lane.b32.xlu0 %v443, 96
    %v446 = vpop.permute.xlu0 %445
    %v447 = vsel %vm122, %v446, 0
    %449 = vmatprep.subr.mxu0 0.0
    %450 = vmatpush1.msra.mxu0 0.0
    %451 = vmatprep.subr.mxu0 0.0
    %452 = vmatpush1.msra.mxu0 0.0
    %453 = vmatprep.subr.mxu0 0.0
    %454 = vmatpush1.msra.mxu0 0.0
    %455 = vmatprep.subr.mxu0 0.0
    %456 = vmatpush1.msra.mxu0 0.0
    %457 = vmatprep.subr.mxu0 0.0
    %458 = vmatpush1.msra.mxu0 0.0
    %459 = vmatprep.subr.mxu0 0.0
    %460 = vmatpush1.msra.mxu0 0.0
    %461 = vmatprep.subr.mxu0 0.0
    %462 = vmatpush1.msra.mxu0 0.0
    %463 = vmatprep.subr.mxu0 0.0
    %464 = vmatpush1.msra.mxu0 0.0
    %465 = vmatprep.subr.mxu0 0.0
    %466 = vmatpush1.msra.mxu0 0.0
    %467 = vmatprep.subr.mxu0 0.0
    %468 = vmatpush1.msra.mxu0 0.0
    %469 = vmatprep.subr.mxu0 0.0
    %470 = vmatpush1.msra.mxu0 0.0
    %471 = vmatprep.subr.mxu0 0.0
    %472 = vmatpush1.msra.mxu0 0.0
    %473 = vmatprep.subr.mxu0 %v179
    %474 = vmatpush1.msra.mxu0 %v178
    %475 = vmatprep.subr.mxu0 %v177
    %476 = vmatpush1.msra.mxu0 %v176
    %477 = vmatprep.subr.mxu0 %v175
    %478 = vmatpush1.msra.mxu0 %v174
    %479 = vmatprep.subr.mxu0 %v173
    %480 = vmatpush1.msra.mxu0 %v172
    %481 = vmatprep.subr.mxu0 0.0
    %482 = vmatpush2.msra.mxu0 0.0
    %483 = vmatprep.subr.mxu0 0.0
    %484 = vmatpush2.msra.mxu0 0.0
    %485 = vmatprep.subr.mxu0 0.0
    %486 = vmatpush2.msra.mxu0 0.0
    %487 = vmatprep.subr.mxu0 0.0
    %488 = vmatpush2.msra.mxu0 0.0
    %489 = vmatprep.subr.mxu0 0.0
    %490 = vmatpush2.msra.mxu0 0.0
    %491 = vmatprep.subr.mxu0 0.0
    %492 = vmatpush2.msra.mxu0 0.0
    %493 = vmatprep.subr.mxu0 0.0
    %494 = vmatpush2.msra.mxu0 0.0
    %495 = vmatprep.subr.mxu0 0.0
    %496 = vmatpush2.msra.mxu0 0.0
    %497 = vmatprep.subr.mxu0 0.0
    %498 = vmatpush2.msra.mxu0 0.0
    %499 = vmatprep.subr.mxu0 0.0
    %500 = vmatpush2.msra.mxu0 0.0
    %501 = vmatprep.subr.mxu0 0.0
    %502 = vmatpush2.msra.mxu0 0.0
    %503 = vmatprep.subr.mxu0 0.0
    %504 = vmatpush2.msra.mxu0 0.0
    %505 = vmatprep.subr.mxu0 0.0
    %506 = vmatpush2.msra.mxu0 0.0
    %507 = vmatprep.subr.mxu0 0.0
    %508 = vmatpush2.msra.mxu0 0.0
    %509 = vmatprep.subr.mxu0 0.0
    %510 = vmatpush2.msra.mxu0 0.0
    %511 = vmatprep.subr.mxu0 0.0
    %512 = vmatpush2.msra.mxu0 0.0
    %513 = vmatprep.mubr.f32.mxu0 0.0
    %514 = vmatmul.mubr.f32.gmra.mxu0 %v447
    %v515 = vpop.f32.mrf.mxu0
    %v516 = vadd.f32 0.0, %v515
    %v517 = vpop.f32.mrf.mxu0
    %v518 = vadd.f32 0.0, %v517
    %519 = vdwg.mxu0
    %v520 = vadd.f32 %v516, %v364
    %v522 = vrot.slane %v520, 6
    %v524 = vadd.f32 %v275, %v522
    %v525 = vxor.u32 %v524, 2147483648
    %v526 = vmul.f32 %v525, 1.442695
    %v527 = vpow.pop %v526
    %v528 = vadd.f32 %v527, 1.0
    %v529 = vrcp.pop %v528
    %v530 = vmul.f32 1.0, %v529
    %531 = vrot.lane.b32.xlu0 %v522, 64
    %v532 = vpop.permute.xlu0 %531
    %v534 = vmul.f32 %v530, %v532
    %536 = vrot.lane.b32.xlu0 %v534, 64
    %v537 = vpop.permute.xlu0 %536
    %v539 = vadd.f32 %v275, %v537
    %v540 = vtanh.pop %v539
    %v541 = vsub.f32 1.0, %v530
    %543 = vrot.lane.b32.xlu0 %v540, 96
    %v544 = vpop.permute.xlu0 %543
    %v546 = vmul.f32 %v541, %v544
    %v547 = vrot.slane %v443, 6
    %v549 = vmul.f32 %v530, %v547
    %v550 = vadd.f32 %v546, %v549
    %v551 = vadd.f32 %v516, %v395
    %v552 = vadd.f32 %v518, %v395
    %v554 = vrot.slane %v551, 1
    %v556 = vadd.f32 %v285, %v554
    %v557 = vxor.u32 %v556, 2147483648
    %v558 = vmul.f32 %v557, 1.442695
    %v559 = vpow.pop %v558
    %v560 = vadd.f32 %v559, 1.0
    %v561 = vrcp.pop %v560
    %v562 = vmul.f32 1.0, %v561
    %v564 = vrot.slane %v552, 1
    %v566 = vadd.f32 %v286, %v564
    %v567 = vxor.u32 %v566, 2147483648
    %v568 = vmul.f32 %v567, 1.442695
    %v569 = vpow.pop %v568
    %v570 = vadd.f32 %v569, 1.0
    %v571 = vrcp.pop %v570
    %v572 = vmul.f32 1.0, %v571
    %573 = vrot.lane.b32.xlu0 %v564, 64
    %v574 = vpop.permute.xlu0 %573
    %v576 = vmul.f32 %v562, %v574
    %578 = vrot.lane.b32.xlu0 %v576, 64
    %v579 = vpop.permute.xlu0 %578
    %v581 = vadd.f32 %v286, %v579
    %v582 = vtanh.pop %v581
    %v583 = vsub.f32 1.0, %v572
    %585 = vrot.lane.b32.xlu0 %v582, 96
    %v586 = vpop.permute.xlu0 %585
    %v588 = vmul.f32 %v583, %v586
    %v589 = vrot.slane %v443, 1
    %590 = vrot.lane.b32.xlu0 %v589, 96
    %v591 = vpop.permute.xlu0 %590
    %v593 = vmul.f32 %v572, %v591
    %v594 = vadd.f32 %v588, %v593
    %v596 = vrot.slane %v550, 2
    %v599 = vrot.slane %v594, 7
    %600 = vrot.lane.b32.xlu0 %v599, 32
    %v601 = vpop.permute.xlu0 %600
    %v603 = vsel %vm442, %v596, %v601
    %605 = vrot.lane.b32.xlu0 %v603, 96
    %v606 = vpop.permute.xlu0 %605
    %v607 = vsel %vm122, %v606, 0
    %609 = vmatprep.subr.mxu0 0.0
    %610 = vmatpush1.msra.mxu0 0.0
    %611 = vmatprep.subr.mxu0 0.0
    %612 = vmatpush1.msra.mxu0 0.0
    %613 = vmatprep.subr.mxu0 0.0
    %614 = vmatpush1.msra.mxu0 0.0
    %615 = vmatprep.subr.mxu0 0.0
    %616 = vmatpush1.msra.mxu0 0.0
    %617 = vmatprep.subr.mxu0 0.0
    %618 = vmatpush1.msra.mxu0 0.0
    %619 = vmatprep.subr.mxu0 0.0
    %620 = vmatpush1.msra.mxu0 0.0
    %621 = vmatprep.subr.mxu0 0.0
    %622 = vmatpush1.msra.mxu0 0.0
    %623 = vmatprep.subr.mxu0 0.0
    %624 = vmatpush1.msra.mxu0 0.0
    %625 = vmatprep.subr.mxu0 0.0
    %626 = vmatpush1.msra.mxu0 0.0
    %627 = vmatprep.subr.mxu0 0.0
    %628 = vmatpush1.msra.mxu0 0.0
    %629 = vmatprep.subr.mxu0 0.0
    %630 = vmatpush1.msra.mxu0 0.0
    %631 = vmatprep.subr.mxu0 0.0
    %632 = vmatpush1.msra.mxu0 0.0
    %633 = vmatprep.subr.mxu0 %v179
    %634 = vmatpush1.msra.mxu0 %v178
    %635 = vmatprep.subr.mxu0 %v177
    %636 = vmatpush1.msra.mxu0 %v176
    %637 = vmatprep.subr.mxu0 %v175
    %638 = vmatpush1.msra.mxu0 %v174
    %639 = vmatprep.subr.mxu0 %v173
    %640 = vmatpush1.msra.mxu0 %v172
    %641 = vmatprep.subr.mxu0 0.0
    %642 = vmatpush2.msra.mxu0 0.0
    %643 = vmatprep.subr.mxu0 0.0
    %644 = vmatpush2.msra.mxu0 0.0
    %645 = vmatprep.subr.mxu0 0.0
    %646 = vmatpush2.msra.mxu0 0.0
    %647 = vmatprep.subr.mxu0 0.0
    %648 = vmatpush2.msra.mxu0 0.0
    %649 = vmatprep.subr.mxu0 0.0
    %650 = vmatpush2.msra.mxu0 0.0
    %651 = vmatprep.subr.mxu0 0.0
    %652 = vmatpush2.msra.mxu0 0.0
    %653 = vmatprep.subr.mxu0 0.0
    %654 = vmatpush2.msra.mxu0 0.0
    %655 = vmatprep.subr.mxu0 0.0
    %656 = vmatpush2.msra.mxu0 0.0
    %657 = vmatprep.subr.mxu0 0.0
    %658 = vmatpush2.msra.mxu0 0.0
    %659 = vmatprep.subr.mxu0 0.0
    %660 = vmatpush2.msra.mxu0 0.0
    %661 = vmatprep.subr.mxu0 0.0
    %662 = vmatpush2.msra.mxu0 0.0
    %663 = vmatprep.subr.mxu0 0.0
    %664 = vmatpush2.msra.mxu0 0.0
    %665 = vmatprep.subr.mxu0 0.0
    %666 = vmatpush2.msra.mxu0 0.0
    %667 = vmatprep.subr.mxu0 0.0
    %668 = vmatpush2.msra.mxu0 0.0
    %669 = vmatprep.subr.mxu0 0.0
    %670 = vmatpush2.msra.mxu0 0.0
    %671 = vmatprep.subr.mxu0 0.0
    %672 = vmatpush2.msra.mxu0 0.0
    %673 = vmatprep.mubr.f32.mxu0 0.0
    %674 = vmatmul.mubr.f32.gmra.mxu0 %v607
    %v675 = vpop.f32.mrf.mxu0
    %v676 = vadd.f32 0.0, %v675
    %v677 = vpop.f32.mrf.mxu0
    %v678 = vadd.f32 0.0, %v677
    %679 = vdwg.mxu0
    %v680 = vadd.f32 %v676, %v364
    %v682 = vrot.slane %v680, 4
    %v684 = vadd.f32 %v275, %v682
    %v685 = vxor.u32 %v684, 2147483648
    %v686 = vmul.f32 %v685, 1.442695
    %v687 = vpow.pop %v686
    %v688 = vadd.f32 %v687, 1.0
    %v689 = vrcp.pop %v688
    %v690 = vmul.f32 1.0, %v689
    %691 = vrot.lane.b32.xlu0 %v682, 64
    %v692 = vpop.permute.xlu0 %691
    %v694 = vmul.f32 %v690, %v692
    %696 = vrot.lane.b32.xlu0 %v694, 64
    %v697 = vpop.permute.xlu0 %696
    %v699 = vadd.f32 %v275, %v697
    %v700 = vtanh.pop %v699
    %v701 = vsub.f32 1.0, %v690
    %703 = vrot.lane.b32.xlu0 %v700, 96
    %v704 = vpop.permute.xlu0 %703
    %v706 = vmul.f32 %v701, %v704
    %v707 = vrot.slane %v603, 4
    %v709 = vmul.f32 %v690, %v707
    %v710 = vadd.f32 %v706, %v709
    %v711 = vadd.f32 %v676, %v395
    %v712 = vadd.f32 %v678, %v395
    %v713 = vadd.f32 %v285, %v711
    %v714 = vxor.u32 %v713, 2147483648
    %v715 = vmul.f32 %v714, 1.442695
    %v716 = vpow.pop %v715
    %v717 = vadd.f32 %v716, 1.0
    %v718 = vrcp.pop %v717
    %v719 = vmul.f32 1.0, %v718
    %v720 = vadd.f32 %v286, %v712
    %v721 = vxor.u32 %v720, 2147483648
    %v722 = vmul.f32 %v721, 1.442695
    %v723 = vpow.pop %v722
    %v724 = vadd.f32 %v723, 1.0
    %v725 = vrcp.pop %v724
    %v726 = vmul.f32 1.0, %v725
    %728 = vrot.lane.b32.xlu0 %v712, 64
    %v729 = vpop.permute.xlu0 %728
    %v731 = vmul.f32 %v719, %v729
    %733 = vrot.lane.b32.xlu0 %v731, 64
    %v734 = vpop.permute.xlu0 %733
    %v736 = vadd.f32 %v286, %v734
    %v737 = vtanh.pop %v736
    %v738 = vsub.f32 1.0, %v726
    %740 = vrot.lane.b32.xlu0 %v737, 96
    %v741 = vpop.permute.xlu0 %740
    %v743 = vmul.f32 %v738, %v741
    %v745 = vmul.f32 %v726, %v606
    %v746 = vadd.f32 %v743, %v745
    %v748 = vrot.slane %v710, 4
    %751 = vrot.lane.b32.xlu0 %v746, 32
    %v752 = vpop.permute.xlu0 %751
    %v754 = vsel %vm442, %v748, %v752
    %756 = vrot.lane.b32.xlu0 %v754, 96
    %v757 = vpop.permute.xlu0 %756
    %v758 = vsel %vm122, %v757, 0
    %760 = vmatprep.subr.mxu0 0.0
    %761 = vmatpush1.msra.mxu0 0.0
    %762 = vmatprep.subr.mxu0 0.0
    %763 = vmatpush1.msra.mxu0 0.0
    %764 = vmatprep.subr.mxu0 0.0
    %765 = vmatpush1.msra.mxu0 0.0
    %766 = vmatprep.subr.mxu0 0.0
    %767 = vmatpush1.msra.mxu0 0.0
    %768 = vmatprep.subr.mxu0 0.0
    %769 = vmatpush1.msra.mxu0 0.0
    %770 = vmatprep.subr.mxu0 0.0
    %771 = vmatpush1.msra.mxu0 0.0
    %772 = vmatprep.subr.mxu0 0.0
    %773 = vmatpush1.msra.mxu0 0.0
    %774 = vmatprep.subr.mxu0 0.0
    %775 = vmatpush1.msra.mxu0 0.0
    %776 = vmatprep.subr.mxu0 0.0
    %777 = vmatpush1.msra.mxu0 0.0
    %778 = vmatprep.subr.mxu0 0.0
    %779 = vmatpush1.msra.mxu0 0.0
    %780 = vmatprep.subr.mxu0 0.0
    %781 = vmatpush1.msra.mxu0 0.0
    %782 = vmatprep.subr.mxu0 0.0
    %783 = vmatpush1.msra.mxu0 0.0
    %784 = vmatprep.subr.mxu0 %v179
    %785 = vmatpush1.msra.mxu0 %v178
    %786 = vmatprep.subr.mxu0 %v177
    %787 = vmatpush1.msra.mxu0 %v176
    %788 = vmatprep.subr.mxu0 %v175
    %789 = vmatpush1.msra.mxu0 %v174
    %790 = vmatprep.subr.mxu0 %v173
    %791 = vmatpush1.msra.mxu0 %v172
    %792 = vmatprep.subr.mxu0 0.0
    %793 = vmatpush2.msra.mxu0 0.0
    %794 = vmatprep.subr.mxu0 0.0
    %795 = vmatpush2.msra.mxu0 0.0
    %796 = vmatprep.subr.mxu0 0.0
    %797 = vmatpush2.msra.mxu0 0.0
    %798 = vmatprep.subr.mxu0 0.0
    %799 = vmatpush2.msra.mxu0 0.0
    %800 = vmatprep.subr.mxu0 0.0
    %801 = vmatpush2.msra.mxu0 0.0
    %802 = vmatprep.subr.mxu0 0.0
    %803 = vmatpush2.msra.mxu0 0.0
    %804 = vmatprep.subr.mxu0 0.0
    %805 = vmatpush2.msra.mxu0 0.0
    %806 = vmatprep.subr.mxu0 0.0
    %807 = vmatpush2.msra.mxu0 0.0
    %808 = vmatprep.subr.mxu0 0.0
    %809 = vmatpush2.msra.mxu0 0.0
    %810 = vmatprep.subr.mxu0 0.0
    %811 = vmatpush2.msra.mxu0 0.0
    %812 = vmatprep.subr.mxu0 0.0
    %813 = vmatpush2.msra.mxu0 0.0
    %814 = vmatprep.subr.mxu0 0.0
    %815 = vmatpush2.msra.mxu0 0.0
    %816 = vmatprep.subr.mxu0 0.0
    %817 = vmatpush2.msra.mxu0 0.0
    %818 = vmatprep.subr.mxu0 0.0
    %819 = vmatpush2.msra.mxu0 0.0
    %820 = vmatprep.subr.mxu0 0.0
    %821 = vmatpush2.msra.mxu0 0.0
    %822 = vmatprep.subr.mxu0 0.0
    %823 = vmatpush2.msra.mxu0 0.0
    %824 = vmatprep.mubr.f32.mxu0 0.0
    %825 = vmatmul.mubr.f32.gmra.mxu0 %v758
    %v826 = vpop.f32.mrf.mxu0
    %v827 = vadd.f32 0.0, %v826
    %v828 = vpop.f32.mrf.mxu0
    %v829 = vadd.f32 0.0, %v828
    %830 = vdwg.mxu0
    %v831 = vadd.f32 %v827, %v364
    %v833 = vrot.slane %v831, 2
    %v835 = vadd.f32 %v275, %v833
    %v836 = vxor.u32 %v835, 2147483648
    %v837 = vmul.f32 %v836, 1.442695
    %v838 = vpow.pop %v837
    %v839 = vadd.f32 %v838, 1.0
    %v840 = vrcp.pop %v839
    %v841 = vmul.f32 1.0, %v840
    %842 = vrot.lane.b32.xlu0 %v833, 64
    %v843 = vpop.permute.xlu0 %842
    %v845 = vmul.f32 %v841, %v843
    %847 = vrot.lane.b32.xlu0 %v845, 64
    %v848 = vpop.permute.xlu0 %847
    %v850 = vadd.f32 %v275, %v848
    %v851 = vtanh.pop %v850
    %v852 = vsub.f32 1.0, %v841
    %854 = vrot.lane.b32.xlu0 %v851, 96
    %v855 = vpop.permute.xlu0 %854
    %v857 = vmul.f32 %v852, %v855
    %v858 = vrot.slane %v754, 2
    %v860 = vmul.f32 %v841, %v858
    %v861 = vadd.f32 %v857, %v860
    %v862 = vadd.f32 %v827, %v395
    %v863 = vadd.f32 %v829, %v395
    %v865 = vrot.slane %v862, 7
    %v867 = vadd.f32 %v285, %v865
    %v868 = vxor.u32 %v867, 2147483648
    %v869 = vmul.f32 %v868, 1.442695
    %v870 = vpow.pop %v869
    %v871 = vadd.f32 %v870, 1.0
    %v872 = vrcp.pop %v871
    %v873 = vmul.f32 1.0, %v872
    %v875 = vrot.slane %v863, 7
    %v877 = vadd.f32 %v286, %v875
    %v878 = vxor.u32 %v877, 2147483648
    %v879 = vmul.f32 %v878, 1.442695
    %v880 = vpow.pop %v879
    %v881 = vadd.f32 %v880, 1.0
    %v882 = vrcp.pop %v881
    %v883 = vmul.f32 1.0, %v882
    %884 = vrot.lane.b32.xlu0 %v875, 64
    %v885 = vpop.permute.xlu0 %884
    %v887 = vmul.f32 %v873, %v885
    %889 = vrot.lane.b32.xlu0 %v887, 64
    %v890 = vpop.permute.xlu0 %889
    %v892 = vadd.f32 %v286, %v890
    %v893 = vtanh.pop %v892
    %v894 = vsub.f32 1.0, %v883
    %896 = vrot.lane.b32.xlu0 %v893, 96
    %v897 = vpop.permute.xlu0 %896
    %v899 = vmul.f32 %v894, %v897
    %v900 = vrot.slane %v754, 7
    %901 = vrot.lane.b32.xlu0 %v900, 96
    %v902 = vpop.permute.xlu0 %901
    %v904 = vmul.f32 %v883, %v902
    %v905 = vadd.f32 %v899, %v904
    %v907 = vrot.slane %v861, 6
    %v910 = vrot.slane %v905, 1
    %911 = vrot.lane.b32.xlu0 %v910, 32
    %v912 = vpop.permute.xlu0 %911
    %v914 = vsel %vm442, %v907, %v912
    %916 = vrot.lane.b32.xlu0 %v914, 96
    %v917 = vpop.permute.xlu0 %916
    %v918 = vsel %vm122, %v917, 0
    %920 = vmatprep.subr.mxu0 0.0
    %921 = vmatpush1.msra.mxu0 0.0
    %922 = vmatprep.subr.mxu0 0.0
    %923 = vmatpush1.msra.mxu0 0.0
    %924 = vmatprep.subr.mxu0 0.0
    %925 = vmatpush1.msra.mxu0 0.0
    %926 = vmatprep.subr.mxu0 0.0
    %927 = vmatpush1.msra.mxu0 0.0
    %928 = vmatprep.subr.mxu0 0.0
    %929 = vmatpush1.msra.mxu0 0.0
    %930 = vmatprep.subr.mxu0 0.0
    %931 = vmatpush1.msra.mxu0 0.0
    %932 = vmatprep.subr.mxu0 0.0
    %933 = vmatpush1.msra.mxu0 0.0
    %934 = vmatprep.subr.mxu0 0.0
    %935 = vmatpush1.msra.mxu0 0.0
    %936 = vmatprep.subr.mxu0 0.0
    %937 = vmatpush1.msra.mxu0 0.0
    %938 = vmatprep.subr.mxu0 0.0
    %939 = vmatpush1.msra.mxu0 0.0
    %940 = vmatprep.subr.mxu0 0.0
    %941 = vmatpush1.msra.mxu0 0.0
    %942 = vmatprep.subr.mxu0 0.0
    %943 = vmatpush1.msra.mxu0 0.0
    %944 = vmatprep.subr.mxu0 %v179
    %945 = vmatpush1.msra.mxu0 %v178
    %946 = vmatprep.subr.mxu0 %v177
    %947 = vmatpush1.msra.mxu0 %v176
    %948 = vmatprep.subr.mxu0 %v175
    %949 = vmatpush1.msra.mxu0 %v174
    %950 = vmatprep.subr.mxu0 %v173
    %951 = vmatpush1.msra.mxu0 %v172
    %952 = vmatprep.subr.mxu0 0.0
    %953 = vmatpush2.msra.mxu0 0.0
    %954 = vmatprep.subr.mxu0 0.0
    %955 = vmatpush2.msra.mxu0 0.0
    %956 = vmatprep.subr.mxu0 0.0
    %957 = vmatpush2.msra.mxu0 0.0
    %958 = vmatprep.subr.mxu0 0.0
    %959 = vmatpush2.msra.mxu0 0.0
    %960 = vmatprep.subr.mxu0 0.0
    %961 = vmatpush2.msra.mxu0 0.0
    %962 = vmatprep.subr.mxu0 0.0
    %963 = vmatpush2.msra.mxu0 0.0
    %964 = vmatprep.subr.mxu0 0.0
    %965 = vmatpush2.msra.mxu0 0.0
    %966 = vmatprep.subr.mxu0 0.0
    %967 = vmatpush2.msra.mxu0 0.0
    %968 = vmatprep.subr.mxu0 0.0
    %969 = vmatpush2.msra.mxu0 0.0
    %970 = vmatprep.subr.mxu0 0.0
    %971 = vmatpush2.msra.mxu0 0.0
    %972 = vmatprep.subr.mxu0 0.0
    %973 = vmatpush2.msra.mxu0 0.0
    %974 = vmatprep.subr.mxu0 0.0
    %975 = vmatpush2.msra.mxu0 0.0
    %976 = vmatprep.subr.mxu0 0.0
    %977 = vmatpush2.msra.mxu0 0.0
    %978 = vmatprep.subr.mxu0 0.0
    %979 = vmatpush2.msra.mxu0 0.0
    %980 = vmatprep.subr.mxu0 0.0
    %981 = vmatpush2.msra.mxu0 0.0
    %982 = vmatprep.subr.mxu0 0.0
    %983 = vmatpush2.msra.mxu0 0.0
    %984 = vmatprep.mubr.f32.mxu0 0.0
    %985 = vmatmul.mubr.f32.gmra.mxu0 %v918
    %v986 = vpop.f32.mrf.mxu0
    %v987 = vadd.f32 0.0, %v986
    %v988 = vpop.f32.mrf.mxu0
    %v989 = vadd.f32 0.0, %v988
    %990 = vdwg.mxu0
    %v991 = vadd.f32 %v987, %v364
    %v992 = vadd.f32 %v276, %v991
    %v993 = vxor.u32 %v992, 2147483648
    %v994 = vmul.f32 %v993, 1.442695
    %v995 = vpow.pop %v994
    %v996 = vadd.f32 %v995, 1.0
    %v997 = vrcp.pop %v996
    %v998 = vmul.f32 1.0, %v997
    %1000 = vrot.lane.b32.xlu0 %v991, 64
    %v1001 = vpop.permute.xlu0 %1000
    %v1003 = vmul.f32 %v998, %v1001
    %1005 = vrot.lane.b32.xlu0 %v1003, 64
    %v1006 = vpop.permute.xlu0 %1005
    %v1008 = vadd.f32 %v276, %v1006
    %v1009 = vtanh.pop %v1008
    %v1010 = vsub.f32 1.0, %v998
    %1012 = vrot.lane.b32.xlu0 %v1009, 96
    %v1013 = vpop.permute.xlu0 %1012
    %v1015 = vmul.f32 %v1010, %v1013
    %v1016 = vmul.f32 %v998, %v914
    %v1017 = vadd.f32 %v1015, %v1016
    %v1018 = vadd.f32 %v987, %v395
    %v1019 = vadd.f32 %v989, %v395
    %v1021 = vrot.slane %v1018, 6
    %v1023 = vadd.f32 %v285, %v1021
    %v1024 = vxor.u32 %v1023, 2147483648
    %v1025 = vmul.f32 %v1024, 1.442695
    %v1026 = vpow.pop %v1025
    %v1027 = vadd.f32 %v1026, 1.0
    %v1028 = vrcp.pop %v1027
    %v1029 = vmul.f32 1.0, %v1028
    %v1031 = vrot.slane %v1019, 6
    %v1033 = vadd.f32 %v286, %v1031
    %v1034 = vxor.u32 %v1033, 2147483648
    %v1035 = vmul.f32 %v1034, 1.442695
    %v1036 = vpow.pop %v1035
    %v1037 = vadd.f32 %v1036, 1.0
    %v1038 = vrcp.pop %v1037
    %v1039 = vmul.f32 1.0, %v1038
    %1040 = vrot.lane.b32.xlu0 %v1031, 64
    %v1041 = vpop.permute.xlu0 %1040
    %v1043 = vmul.f32 %v1029, %v1041
    %1045 = vrot.lane.b32.xlu0 %v1043, 64
    %v1046 = vpop.permute.xlu0 %1045
    %v1048 = vadd.f32 %v286, %v1046
    %v1049 = vtanh.pop %v1048
    %v1050 = vsub.f32 1.0, %v1039
    %1052 = vrot.lane.b32.xlu0 %v1049, 96
    %v1053 = vpop.permute.xlu0 %1052
    %v1055 = vmul.f32 %v1050, %v1053
    %v1056 = vrot.slane %v914, 6
    %1057 = vrot.lane.b32.xlu0 %v1056, 96
    %v1058 = vpop.permute.xlu0 %1057
    %v1060 = vmul.f32 %v1039, %v1058
    %v1061 = vadd.f32 %v1055, %v1060
    %v1063 = vrot.slane %v1061, 2
    %1064 = vrot.lane.b32.xlu0 %v1063, 32
    %v1065 = vpop.permute.xlu0 %1064
    %v1067 = vsel %vm442, %v1017, %v1065
    %1069 = vrot.lane.b32.xlu0 %v1067, 96
    %v1070 = vpop.permute.xlu0 %1069
    %v1071 = vsel %vm122, %v1070, 0
    %1073 = vmatprep.subr.mxu0 0.0
    %1074 = vmatpush1.msra.mxu0 0.0
    %1075 = vmatprep.subr.mxu0 0.0
    %1076 = vmatpush1.msra.mxu0 0.0
    %1077 = vmatprep.subr.mxu0 0.0
    %1078 = vmatpush1.msra.mxu0 0.0
    %1079 = vmatprep.subr.mxu0 0.0
    %1080 = vmatpush1.msra.mxu0 0.0
    %1081 = vmatprep.subr.mxu0 0.0
    %1082 = vmatpush1.msra.mxu0 0.0
    %1083 = vmatprep.subr.mxu0 0.0
    %1084 = vmatpush1.msra.mxu0 0.0
    %1085 = vmatprep.subr.mxu0 0.0
    %1086 = vmatpush1.msra.mxu0 0.0
    %1087 = vmatprep.subr.mxu0 0.0
    %1088 = vmatpush1.msra.mxu0 0.0
    %1089 = vmatprep.subr.mxu0 0.0
    %1090 = vmatpush1.msra.mxu0 0.0
    %1091 = vmatprep.subr.mxu0 0.0
    %1092 = vmatpush1.msra.mxu0 0.0
    %1093 = vmatprep.subr.mxu0 0.0
    %1094 = vmatpush1.msra.mxu0 0.0
    %1095 = vmatprep.subr.mxu0 0.0
    %1096 = vmatpush1.msra.mxu0 0.0
    %1097 = vmatprep.subr.mxu0 %v179
    %1098 = vmatpush1.msra.mxu0 %v178
    %1099 = vmatprep.subr.mxu0 %v177
    %1100 = vmatpush1.msra.mxu0 %v176
    %1101 = vmatprep.subr.mxu0 %v175
    %1102 = vmatpush1.msra.mxu0 %v174
    %1103 = vmatprep.subr.mxu0 %v173
    %1104 = vmatpush1.msra.mxu0 %v172
    %1105 = vmatprep.subr.mxu0 0.0
    %1106 = vmatpush2.msra.mxu0 0.0
    %1107 = vmatprep.subr.mxu0 0.0
    %1108 = vmatpush2.msra.mxu0 0.0
    %1109 = vmatprep.subr.mxu0 0.0
    %1110 = vmatpush2.msra.mxu0 0.0
    %1111 = vmatprep.subr.mxu0 0.0
    %1112 = vmatpush2.msra.mxu0 0.0
    %1113 = vmatprep.subr.mxu0 0.0
    %1114 = vmatpush2.msra.mxu0 0.0
    %1115 = vmatprep.subr.mxu0 0.0
    %1116 = vmatpush2.msra.mxu0 0.0
    %1117 = vmatprep.subr.mxu0 0.0
    %1118 = vmatpush2.msra.mxu0 0.0
    %1119 = vmatprep.subr.mxu0 0.0
    %1120 = vmatpush2.msra.mxu0 0.0
    %1121 = vmatprep.subr.mxu0 0.0
    %1122 = vmatpush2.msra.mxu0 0.0
    %1123 = vmatprep.subr.mxu0 0.0
    %1124 = vmatpush2.msra.mxu0 0.0
    %1125 = vmatprep.subr.mxu0 0.0
    %1126 = vmatpush2.msra.mxu0 0.0
    %1127 = vmatprep.subr.mxu0 0.0
    %1128 = vmatpush2.msra.mxu0 0.0
    %1129 = vmatprep.subr.mxu0 0.0
    %1130 = vmatpush2.msra.mxu0 0.0
    %1131 = vmatprep.subr.mxu0 0.0
    %1132 = vmatpush2.msra.mxu0 0.0
    %1133 = vmatprep.subr.mxu0 0.0
    %1134 = vmatpush2.msra.mxu0 0.0
    %1135 = vmatprep.subr.mxu0 0.0
    %1136 = vmatpush2.msra.mxu0 0.0
    %1137 = vmatprep.mubr.f32.mxu0 0.0
    %1138 = vmatmul.mubr.f32.gmra.mxu0 %v1071
    %v1139 = vpop.f32.mrf.mxu0
    %v1140 = vadd.f32 0.0, %v1139
    %v1141 = vpop.f32.mrf.mxu0
    %v1142 = vadd.f32 0.0, %v1141
    %1143 = vdwg.mxu0
    %v1144 = vadd.f32 %v1140, %v364
    %v1146 = vrot.slane %v1144, 6
    %v1148 = vadd.f32 %v276, %v1146
    %v1149 = vxor.u32 %v1148, 2147483648
    %v1150 = vmul.f32 %v1149, 1.442695
    %v1151 = vpow.pop %v1150
    %v1152 = vadd.f32 %v1151, 1.0
    %v1153 = vrcp.pop %v1152
    %v1154 = vmul.f32 1.0, %v1153
    %1155 = vrot.lane.b32.xlu0 %v1146, 64
    %v1156 = vpop.permute.xlu0 %1155
    %v1158 = vmul.f32 %v1154, %v1156
    %1160 = vrot.lane.b32.xlu0 %v1158, 64
    %v1161 = vpop.permute.xlu0 %1160
    %v1163 = vadd.f32 %v276, %v1161
    %v1164 = vtanh.pop %v1163
    %v1165 = vsub.f32 1.0, %v1154
    %1167 = vrot.lane.b32.xlu0 %v1164, 96
    %v1168 = vpop.permute.xlu0 %1167
    %v1170 = vmul.f32 %v1165, %v1168
    %v1171 = vrot.slane %v1067, 6
    %v1173 = vmul.f32 %v1154, %v1171
    %v1174 = vadd.f32 %v1170, %v1173
    %v1175 = vadd.f32 %v1140, %v395
    %v1176 = vadd.f32 %v1142, %v395
    %v1178 = vrot.slane %v1175, 5
    %v1180 = vadd.f32 %v285, %v1178
    %v1181 = vxor.u32 %v1180, 2147483648
    %v1182 = vmul.f32 %v1181, 1.442695
    %v1183 = vpow.pop %v1182
    %v1184 = vadd.f32 %v1183, 1.0
    %v1185 = vrcp.pop %v1184
    %v1186 = vmul.f32 1.0, %v1185
    %v1188 = vrot.slane %v1176, 5
    %v1190 = vadd.f32 %v286, %v1188
    %v1191 = vxor.u32 %v1190, 2147483648
    %v1192 = vmul.f32 %v1191, 1.442695
    %v1193 = vpow.pop %v1192
    %v1194 = vadd.f32 %v1193, 1.0
    %v1195 = vrcp.pop %v1194
    %v1196 = vmul.f32 1.0, %v1195
    %1197 = vrot.lane.b32.xlu0 %v1188, 64
    %v1198 = vpop.permute.xlu0 %1197
    %v1200 = vmul.f32 %v1186, %v1198
    %1202 = vrot.lane.b32.xlu0 %v1200, 64
    %v1203 = vpop.permute.xlu0 %1202
    %v1205 = vadd.f32 %v286, %v1203
    %v1206 = vtanh.pop %v1205
    %v1207 = vsub.f32 1.0, %v1196
    %1209 = vrot.lane.b32.xlu0 %v1206, 96
    %v1210 = vpop.permute.xlu0 %1209
    %v1212 = vmul.f32 %v1207, %v1210
    %v1213 = vrot.slane %v1067, 5
    %1214 = vrot.lane.b32.xlu0 %v1213, 96
    %v1215 = vpop.permute.xlu0 %1214
    %v1217 = vmul.f32 %v1196, %v1215
    %v1218 = vadd.f32 %v1212, %v1217
    %v1220 = vrot.slane %v1174, 2
    %v1223 = vrot.slane %v1218, 3
    %1224 = vrot.lane.b32.xlu0 %v1223, 32
    %v1225 = vpop.permute.xlu0 %1224
    %v1227 = vsel %vm442, %v1220, %v1225
    %1229 = vrot.lane.b32.xlu0 %v1227, 96
    %v1230 = vpop.permute.xlu0 %1229
    %v1231 = vsel %vm122, %v1230, 0
    %1233 = vmatprep.subr.mxu0 0.0
    %1234 = vmatpush1.msra.mxu0 0.0
    %1235 = vmatprep.subr.mxu0 0.0
    %1236 = vmatpush1.msra.mxu0 0.0
    %1237 = vmatprep.subr.mxu0 0.0
    %1238 = vmatpush1.msra.mxu0 0.0
    %1239 = vmatprep.subr.mxu0 0.0
    %1240 = vmatpush1.msra.mxu0 0.0
    %1241 = vmatprep.subr.mxu0 0.0
    %1242 = vmatpush1.msra.mxu0 0.0
    %1243 = vmatprep.subr.mxu0 0.0
    %1244 = vmatpush1.msra.mxu0 0.0
    %1245 = vmatprep.subr.mxu0 0.0
    %1246 = vmatpush1.msra.mxu0 0.0
    %1247 = vmatprep.subr.mxu0 0.0
    %1248 = vmatpush1.msra.mxu0 0.0
    %1249 = vmatprep.subr.mxu0 0.0
    %1250 = vmatpush1.msra.mxu0 0.0
    %1251 = vmatprep.subr.mxu0 0.0
    %1252 = vmatpush1.msra.mxu0 0.0
    %1253 = vmatprep.subr.mxu0 0.0
    %1254 = vmatpush1.msra.mxu0 0.0
    %1255 = vmatprep.subr.mxu0 0.0
    %1256 = vmatpush1.msra.mxu0 0.0
    %1257 = vmatprep.subr.mxu0 %v179
    %1258 = vmatpush1.msra.mxu0 %v178
    %1259 = vmatprep.subr.mxu0 %v177
    %1260 = vmatpush1.msra.mxu0 %v176
    %1261 = vmatprep.subr.mxu0 %v175
    %1262 = vmatpush1.msra.mxu0 %v174
    %1263 = vmatprep.subr.mxu0 %v173
    %1264 = vmatpush1.msra.mxu0 %v172
    %1265 = vmatprep.subr.mxu0 0.0
    %1266 = vmatpush2.msra.mxu0 0.0
    %1267 = vmatprep.subr.mxu0 0.0
    %1268 = vmatpush2.msra.mxu0 0.0
    %1269 = vmatprep.subr.mxu0 0.0
    %1270 = vmatpush2.msra.mxu0 0.0
    %1271 = vmatprep.subr.mxu0 0.0
    %1272 = vmatpush2.msra.mxu0 0.0
    %1273 = vmatprep.subr.mxu0 0.0
    %1274 = vmatpush2.msra.mxu0 0.0
    %1275 = vmatprep.subr.mxu0 0.0
    %1276 = vmatpush2.msra.mxu0 0.0
    %1277 = vmatprep.subr.mxu0 0.0
    %1278 = vmatpush2.msra.mxu0 0.0
    %1279 = vmatprep.subr.mxu0 0.0
    %1280 = vmatpush2.msra.mxu0 0.0
    %1281 = vmatprep.subr.mxu0 0.0
    %1282 = vmatpush2.msra.mxu0 0.0
    %1283 = vmatprep.subr.mxu0 0.0
    %1284 = vmatpush2.msra.mxu0 0.0
    %1285 = vmatprep.subr.mxu0 0.0
    %1286 = vmatpush2.msra.mxu0 0.0
    %1287 = vmatprep.subr.mxu0 0.0
    %1288 = vmatpush2.msra.mxu0 0.0
    %1289 = vmatprep.subr.mxu0 0.0
    %1290 = vmatpush2.msra.mxu0 0.0
    %1291 = vmatprep.subr.mxu0 0.0
    %1292 = vmatpush2.msra.mxu0 0.0
    %1293 = vmatprep.subr.mxu0 0.0
    %1294 = vmatpush2.msra.mxu0 0.0
    %1295 = vmatprep.subr.mxu0 0.0
    %1296 = vmatpush2.msra.mxu0 0.0
    %1297 = vmatprep.mubr.f32.mxu0 0.0
    %1298 = vmatmul.mubr.f32.gmra.mxu0 %v1231
    %v1299 = vpop.f32.mrf.mxu0
    %v1300 = vadd.f32 0.0, %v1299
    %v1301 = vpop.f32.mrf.mxu0
    %v1302 = vadd.f32 0.0, %v1301
    %1303 = vdwg.mxu0
    %v1304 = vadd.f32 %v1300, %v364
    %v1306 = vrot.slane %v1304, 4
    %v1308 = vadd.f32 %v276, %v1306
    %v1309 = vxor.u32 %v1308, 2147483648
    %v1310 = vmul.f32 %v1309, 1.442695
    %v1311 = vpow.pop %v1310
    %v1312 = vadd.f32 %v1311, 1.0
    %v1313 = vrcp.pop %v1312
    %v1314 = vmul.f32 1.0, %v1313
    %1315 = vrot.lane.b32.xlu0 %v1306, 64
    %v1316 = vpop.permute.xlu0 %1315
    %v1318 = vmul.f32 %v1314, %v1316
    %1320 = vrot.lane.b32.xlu0 %v1318, 64
    %v1321 = vpop.permute.xlu0 %1320
    %v1323 = vadd.f32 %v276, %v1321
    %v1324 = vtanh.pop %v1323
    %v1325 = vsub.f32 1.0, %v1314
    %1327 = vrot.lane.b32.xlu0 %v1324, 96
    %v1328 = vpop.permute.xlu0 %1327
    %v1330 = vmul.f32 %v1325, %v1328
    %v1331 = vrot.slane %v1227, 4
    %v1333 = vmul.f32 %v1314, %v1331
    %v1334 = vadd.f32 %v1330, %v1333
    %v1335 = vadd.f32 %v1300, %v395
    %v1336 = vadd.f32 %v1302, %v395
    %v1338 = vrot.slane %v1335, 4
    %v1340 = vadd.f32 %v285, %v1338
    %v1341 = vxor.u32 %v1340, 2147483648
    %v1342 = vmul.f32 %v1341, 1.442695
    %v1343 = vpow.pop %v1342
    %v1344 = vadd.f32 %v1343, 1.0
    %v1345 = vrcp.pop %v1344
    %v1346 = vmul.f32 1.0, %v1345
    %v1348 = vrot.slane %v1336, 4
    %v1350 = vadd.f32 %v286, %v1348
    %v1351 = vxor.u32 %v1350, 2147483648
    %v1352 = vmul.f32 %v1351, 1.442695
    %v1353 = vpow.pop %v1352
    %v1354 = vadd.f32 %v1353, 1.0
    %v1355 = vrcp.pop %v1354
    %v1356 = vmul.f32 1.0, %v1355
    %1357 = vrot.lane.b32.xlu0 %v1348, 64
    %v1358 = vpop.permute.xlu0 %1357
    %v1360 = vmul.f32 %v1346, %v1358
    %1362 = vrot.lane.b32.xlu0 %v1360, 64
    %v1363 = vpop.permute.xlu0 %1362
    %v1365 = vadd.f32 %v286, %v1363
    %v1366 = vtanh.pop %v1365
    %v1367 = vsub.f32 1.0, %v1356
    %1369 = vrot.lane.b32.xlu0 %v1366, 96
    %v1370 = vpop.permute.xlu0 %1369
    %v1372 = vmul.f32 %v1367, %v1370
    %1373 = vrot.lane.b32.xlu0 %v1331, 96
    %v1374 = vpop.permute.xlu0 %1373
    %v1376 = vmul.f32 %v1356, %v1374
    %v1377 = vadd.f32 %v1372, %v1376
    %v1379 = vrot.slane %v1334, 4
    %v1382 = vrot.slane %v1377, 4
    %1383 = vrot.lane.b32.xlu0 %v1382, 32
    %v1384 = vpop.permute.xlu0 %1383
    %v1386 = vsel %vm442, %v1379, %v1384
    %1388 = vrot.lane.b32.xlu0 %v1386, 96
    %v1389 = vpop.permute.xlu0 %1388
    %v1390 = vsel %vm122, %v1389, 0
    %1392 = vmatprep.subr.mxu0 0.0
    %1393 = vmatpush1.msra.mxu0 0.0
    %1394 = vmatprep.subr.mxu0 0.0
    %1395 = vmatpush1.msra.mxu0 0.0
    %1396 = vmatprep.subr.mxu0 0.0
    %1397 = vmatpush1.msra.mxu0 0.0
    %1398 = vmatprep.subr.mxu0 0.0
    %1399 = vmatpush1.msra.mxu0 0.0
    %1400 = vmatprep.subr.mxu0 0.0
    %1401 = vmatpush1.msra.mxu0 0.0
    %1402 = vmatprep.subr.mxu0 0.0
    %1403 = vmatpush1.msra.mxu0 0.0
    %1404 = vmatprep.subr.mxu0 0.0
    %1405 = vmatpush1.msra.mxu0 0.0
    %1406 = vmatprep.subr.mxu0 0.0
    %1407 = vmatpush1.msra.mxu0 0.0
    %1408 = vmatprep.subr.mxu0 0.0
    %1409 = vmatpush1.msra.mxu0 0.0
    %1410 = vmatprep.subr.mxu0 0.0
    %1411 = vmatpush1.msra.mxu0 0.0
    %1412 = vmatprep.subr.mxu0 0.0
    %1413 = vmatpush1.msra.mxu0 0.0
    %1414 = vmatprep.subr.mxu0 0.0
    %1415 = vmatpush1.msra.mxu0 0.0
    %1416 = vmatprep.subr.mxu0 %v179
    %1417 = vmatpush1.msra.mxu0 %v178
    %1418 = vmatprep.subr.mxu0 %v177
    %1419 = vmatpush1.msra.mxu0 %v176
    %1420 = vmatprep.subr.mxu0 %v175
    %1421 = vmatpush1.msra.mxu0 %v174
    %1422 = vmatprep.subr.mxu0 %v173
    %1423 = vmatpush1.msra.mxu0 %v172
    %1424 = vmatprep.subr.mxu0 0.0
    %1425 = vmatpush2.msra.mxu0 0.0
    %1426 = vmatprep.subr.mxu0 0.0
    %1427 = vmatpush2.msra.mxu0 0.0
    %1428 = vmatprep.subr.mxu0 0.0
    %1429 = vmatpush2.msra.mxu0 0.0
    %1430 = vmatprep.subr.mxu0 0.0
    %1431 = vmatpush2.msra.mxu0 0.0
    %1432 = vmatprep.subr.mxu0 0.0
    %1433 = vmatpush2.msra.mxu0 0.0
    %1434 = vmatprep.subr.mxu0 0.0
    %1435 = vmatpush2.msra.mxu0 0.0
    %1436 = vmatprep.subr.mxu0 0.0
    %1437 = vmatpush2.msra.mxu0 0.0
    %1438 = vmatprep.subr.mxu0 0.0
    %1439 = vmatpush2.msra.mxu0 0.0
    %1440 = vmatprep.subr.mxu0 0.0
    %1441 = vmatpush2.msra.mxu0 0.0
    %1442 = vmatprep.subr.mxu0 0.0
    %1443 = vmatpush2.msra.mxu0 0.0
    %1444 = vmatprep.subr.mxu0 0.0
    %1445 = vmatpush2.msra.mxu0 0.0
    %1446 = vmatprep.subr.mxu0 0.0
    %1447 = vmatpush2.msra.mxu0 0.0
    %1448 = vmatprep.subr.mxu0 0.0
    %1449 = vmatpush2.msra.mxu0 0.0
    %1450 = vmatprep.subr.mxu0 0.0
    %1451 = vmatpush2.msra.mxu0 0.0
    %1452 = vmatprep.subr.mxu0 0.0
    %1453 = vmatpush2.msra.mxu0 0.0
    %1454 = vmatprep.subr.mxu0 0.0
    %1455 = vmatpush2.msra.mxu0 0.0
    %1456 = vmatprep.mubr.f32.mxu0 0.0
    %1457 = vmatmul.mubr.f32.gmra.mxu0 %v1390
    %v1458 = vpop.f32.mrf.mxu0
    %v1459 = vadd.f32 0.0, %v1458
    %v1460 = vpop.f32.mrf.mxu0
    %v1461 = vadd.f32 0.0, %v1460
    %1462 = vdwg.mxu0
    %v1463 = vadd.f32 %v1459, %v364
    %v1465 = vrot.slane %v1463, 2
    %v1467 = vadd.f32 %v276, %v1465
    %v1468 = vxor.u32 %v1467, 2147483648
    %v1469 = vmul.f32 %v1468, 1.442695
    %v1470 = vpow.pop %v1469
    %v1471 = vadd.f32 %v1470, 1.0
    %v1472 = vrcp.pop %v1471
    %v1473 = vmul.f32 1.0, %v1472
    %1474 = vrot.lane.b32.xlu0 %v1465, 64
    %v1475 = vpop.permute.xlu0 %1474
    %v1477 = vmul.f32 %v1473, %v1475
    %1479 = vrot.lane.b32.xlu0 %v1477, 64
    %v1480 = vpop.permute.xlu0 %1479
    %v1482 = vadd.f32 %v276, %v1480
    %v1483 = vtanh.pop %v1482
    %v1484 = vsub.f32 1.0, %v1473
    %1486 = vrot.lane.b32.xlu0 %v1483, 96
    %v1487 = vpop.permute.xlu0 %1486
    %v1489 = vmul.f32 %v1484, %v1487
    %v1490 = vrot.slane %v1386, 2
    %v1492 = vmul.f32 %v1473, %v1490
    %v1493 = vadd.f32 %v1489, %v1492
    %v1494 = vadd.f32 %v1459, %v395
    %v1495 = vadd.f32 %v1461, %v395
    %v1497 = vrot.slane %v1494, 3
    %v1499 = vadd.f32 %v285, %v1497
    %v1500 = vxor.u32 %v1499, 2147483648
    %v1501 = vmul.f32 %v1500, 1.442695
    %v1502 = vpow.pop %v1501
    %v1503 = vadd.f32 %v1502, 1.0
    %v1504 = vrcp.pop %v1503
    %v1505 = vmul.f32 1.0, %v1504
    %v1507 = vrot.slane %v1495, 3
    %v1509 = vadd.f32 %v286, %v1507
    %v1510 = vxor.u32 %v1509, 2147483648
    %v1511 = vmul.f32 %v1510, 1.442695
    %v1512 = vpow.pop %v1511
    %v1513 = vadd.f32 %v1512, 1.0
    %v1514 = vrcp.pop %v1513
    %v1515 = vmul.f32 1.0, %v1514
    %1516 = vrot.lane.b32.xlu0 %v1507, 64
    %v1517 = vpop.permute.xlu0 %1516
    %v1519 = vmul.f32 %v1505, %v1517
    %1521 = vrot.lane.b32.xlu0 %v1519, 64
    %v1522 = vpop.permute.xlu0 %1521
    %v1524 = vadd.f32 %v286, %v1522
    %v1525 = vtanh.pop %v1524
    %v1526 = vsub.f32 1.0, %v1515
    %1528 = vrot.lane.b32.xlu0 %v1525, 96
    %v1529 = vpop.permute.xlu0 %1528
    %v1531 = vmul.f32 %v1526, %v1529
    %v1532 = vrot.slane %v1386, 3
    %1533 = vrot.lane.b32.xlu0 %v1532, 96
    %v1534 = vpop.permute.xlu0 %1533
    %v1536 = vmul.f32 %v1515, %v1534
    %v1537 = vadd.f32 %v1531, %v1536
    %v1539 = vrot.slane %v1493, 6
    %v1542 = vrot.slane %v1537, 5
    %1543 = vrot.lane.b32.xlu0 %v1542, 32
    %v1544 = vpop.permute.xlu0 %1543
    %v1546 = vsel %vm442, %v1539, %v1544
    %v1547 = vld [vmem:[%s3] sm:$0xff]
    %v1548 = vld [vmem:[%s3 + $0x8] sm:$0xff]
    %v1549 = vld [vmem:[%s3 + $0x10] sm:$0xff]
    %v1550 = vld [vmem:[%s3 + $0x18] sm:$0xff]
    %1552 = vrot.lane.b32.xlu0 %v1546, 96
    %v1553 = vpop.permute.xlu0 %1552
    %v1554 = vsel %vm122, %v1553, 0
    %1556 = vmatprep.subr.mxu0 0.0
    %1557 = vmatpush1.msra.mxu0 0.0
    %1558 = vmatprep.subr.mxu0 0.0
    %1559 = vmatpush1.msra.mxu0 0.0
    %1560 = vmatprep.subr.mxu0 0.0
    %1561 = vmatpush1.msra.mxu0 0.0
    %1562 = vmatprep.subr.mxu0 0.0
    %1563 = vmatpush1.msra.mxu0 0.0
    %1564 = vmatprep.subr.mxu0 0.0
    %1565 = vmatpush1.msra.mxu0 0.0
    %1566 = vmatprep.subr.mxu0 0.0
    %1567 = vmatpush1.msra.mxu0 0.0
    %1568 = vmatprep.subr.mxu0 0.0
    %1569 = vmatpush1.msra.mxu0 0.0
    %1570 = vmatprep.subr.mxu0 0.0
    %1571 = vmatpush1.msra.mxu0 0.0
    %1572 = vmatprep.subr.mxu0 0.0
    %1573 = vmatpush1.msra.mxu0 0.0
    %1574 = vmatprep.subr.mxu0 0.0
    %1575 = vmatpush1.msra.mxu0 0.0
    %1576 = vmatprep.subr.mxu0 0.0
    %1577 = vmatpush1.msra.mxu0 0.0
    %1578 = vmatprep.subr.mxu0 0.0
    %1579 = vmatpush1.msra.mxu0 0.0
    %1580 = vmatprep.subr.mxu0 0.0
    %1581 = vmatpush1.msra.mxu0 %v1550
    %1582 = vmatprep.subr.mxu0 0.0
    %1583 = vmatpush1.msra.mxu0 %v1549
    %1584 = vmatprep.subr.mxu0 0.0
    %1585 = vmatpush1.msra.mxu0 %v1548
    %1586 = vmatprep.subr.mxu0 0.0
    %1587 = vmatpush1.msra.mxu0 %v1547
    %1588 = vmatprep.subr.mxu0 0.0
    %1589 = vmatpush2.msra.mxu0 0.0
    %1590 = vmatprep.subr.mxu0 0.0
    %1591 = vmatpush2.msra.mxu0 0.0
    %1592 = vmatprep.subr.mxu0 0.0
    %1593 = vmatpush2.msra.mxu0 0.0
    %1594 = vmatprep.subr.mxu0 0.0
    %1595 = vmatpush2.msra.mxu0 0.0
    %1596 = vmatprep.subr.mxu0 0.0
    %1597 = vmatpush2.msra.mxu0 0.0
    %1598 = vmatprep.subr.mxu0 0.0
    %1599 = vmatpush2.msra.mxu0 0.0
    %1600 = vmatprep.subr.mxu0 0.0
    %1601 = vmatpush2.msra.mxu0 0.0
    %1602 = vmatprep.subr.mxu0 0.0
    %1603 = vmatpush2.msra.mxu0 0.0
    %1604 = vmatprep.subr.mxu0 0.0
    %1605 = vmatpush2.msra.mxu0 0.0
    %1606 = vmatprep.subr.mxu0 0.0
    %1607 = vmatpush2.msra.mxu0 0.0
    %1608 = vmatprep.subr.mxu0 0.0
    %1609 = vmatpush2.msra.mxu0 0.0
    %1610 = vmatprep.subr.mxu0 0.0
    %1611 = vmatpush2.msra.mxu0 0.0
    %1612 = vmatprep.subr.mxu0 0.0
    %1613 = vmatpush2.msra.mxu0 0.0
    %1614 = vmatprep.subr.mxu0 0.0
    %1615 = vmatpush2.msra.mxu0 0.0
    %1616 = vmatprep.subr.mxu0 0.0
    %1617 = vmatpush2.msra.mxu0 0.0
    %1618 = vmatprep.subr.mxu0 0.0
    %1619 = vmatpush2.msra.mxu0 0.0
    %1620 = vmatprep.mubr.f32.mxu0 0.0
    %1621 = vmatmul.mubr.f32.gmra.mxu0 %v1554
    %v1622 = vpop.f32.mrf.mxu0
    %v1623 = vadd.f32 0.0, %v1622
    %v1624 = vpop.f32.mrf.mxu0
    %1625 = vdwg.mxu0
    %v1626 = vlaneseq
    %v1627 = vshrl.u32 %v1626, 7
    %v1628 = vsub.s32 7, %v1627
    %v1629 = vrot.slane %v24, %v1628
    %v1630 = vadd.f32 %v1623, %v1629
    %v1632 = vrot.slane %v25, 6
    %1633 = vrot.lane.b32.xlu0 %v1632, 4
    %v1634 = vpop.permute.xlu0 %1633
    %v1636 = vadd.f32 %v1623, %v1634
    %v1637 = vlaneseq
    %v1638 = vshrl.u32 %v1637, 7
    %v1639 = vsub.s32 2, %v1638
    %v1640 = vrot.slane %v1636, %v1639
    %1642 = vrot.lane.b32.xlu0 %v1640, 124
    %v1643 = vpop.permute.xlu0 %1642
    %v1645 = vmul.f32 %v1630, %v1643
    %vm1646 = vcmask 25600
    %v1647 = vsel %vm1646, %v1645, 0.0
    %1648 = vadd.xlane.f32.xlu0 %v1647
    %v1649 = vpop.xlane.xlu0 %1648
    %v1650 = vmul.f32 %v1630, %v1630
    %v1651 = vsel %vm1646, %v1650, 0.0
    %1652 = vadd.xlane.f32.xlu0 %v1651
    %v1653 = vpop.xlane.xlu0 %1652
    %v1654 = vmul.f32 %v1636, %v1636
    %1656 = vrot.lane.b32.xlu0 %v1654, 124
    %v1657 = vpop.permute.xlu0 %1656
    %vm1659 = vcmask 26626
    %v1660 = vsel %vm1659, %v1657, 0.0
    %1661 = vadd.xlane.f32.xlu0 %v1660
    %v1662 = vpop.xlane.xlu0 %1661
    %v1663 = vlaneseq
    %v1664 = vshrl.u32 %v1663, 7
    %v1665 = vsub.s32 2, %v1664
    %v1666 = vrot.slane %v1662, %v1665
    %v1667 = vmul.f32 %v1653, %v1666
    %v1668 = vmax.f32 %v1667, 1e-16
    %v1669 = vrsqrt.pop %v1668
    %v1670 = vmul.f32 %v1649, %v1669
    %v1671 = vmul.f32 %v1670, %v1623
    %v1672 = vlaneseq
    %v1673 = vshrl.u32 %v1672, 7
    %v1674 = vsub.s32 1, %v1673
    %v1675 = vrot.slane %v25, %v1674
    %1677 = vrot.lane.b32.xlu0 %v1675, 8
    %v1678 = vpop.permute.xlu0 %1677
    %v1680 = vadd.f32 %v1671, %v1678
    %1682 = vrot.lane.b32.xlu0 %v1680, 120
    %v1683 = vpop.permute.xlu0 %1682
    %1685 = vst.msk [vmem:[#allocation2] sm:$0x3] %vm1646, %v1683
    // Predicated region
    $region26: #{memory_discriminator_forward.1} parent=1 // pred_check
      _
    $region27: #{memory_discriminator_forward.1} parent=1 // pred_check_branch
      %1687 = sbr.rel (0) target = $region29
    $region28: #{memory_discriminator_forward.1} parent=1 // pred_region
      %s1689 = ssub.s32 32, 32
      %1690 = vsyncadd [#allocation3], %s1689
      %s1692 = sshll.u32 [#allocation2], 4
      %s1693 = int_to_ptr.vmem [resolvable:$true] %s1692
      %1695 = dma.vmem_to_hbm [thread:$0]  %s1693, 32, %s6, [#allocation3]
    $region29: #{memory_discriminator_forward.1} parent=1 // pred_fallthru
      _
    // Predicated region
    $region30: #{memory_discriminator_forward.1} parent=1 // pred_check
      _
    $region31: #{memory_discriminator_forward.1} parent=1 // pred_check_branch
      %1697 = sbr.rel (0) target = $region33
    $region32: #{memory_discriminator_forward.1} parent=1 // pred_region
      %1698 = dma.done [#allocation3], 32
    $region33: #{memory_discriminator_forward.1} parent=1 // pred_fallthru
      _
    %1699 = vsyncpa [#allocation3], 1

</llo_original>
